<compile_context>
chip_gen: v6e
topology: v6e:2x2x1
jax: 0.10.0
libtpu: 0.0.40
codegen_flags: <defaults>
</compile_context>

<pallas_src>
import jax
import jax.numpy as jnp
from jax import lax
from jax.experimental import pallas as pl
from jax.experimental.pallas import tpu as pltpu

# ---- model hyper-parameters (small, consistent with the module) ------------
BATCH = 2
SEQ = 8            # n (number of nodes / tokens)
EMB = 32           # embedding_dim
HEAD_NUM = 4
QKV_DIM = 8        # qkv_dim  (HEAD_NUM * QKV_DIM == EMB, as in POMO)
FF_HID = 64        # ff_hidden_dim
EPS = 1e-5         # nn.InstanceNorm1d default eps

# ---- packed-weight slab layout (rows are 8-aligned, lane width = FF_HID) ----
SLAB_LANES = FF_HID                       # 64
R_QKV = 0                                 # rows   0:128  lanes 0:24  (H*E, 3*D)
R_WC = HEAD_NUM * EMB                     # rows 128:160  lanes 0:32  (H*D, E)
R_W1 = R_WC + HEAD_NUM * QKV_DIM          # rows 160:192  lanes 0:64  (E, FF)
R_W2 = R_W1 + EMB                         # rows 192:256  lanes 0:32  (FF, E)
SLAB_ROWS = R_W2 + FF_HID                 # 256


def _instance_norm(a, gamma, beta):
    """a: (B, N, E); gamma/beta: (1, E).  nn.InstanceNorm1d over the sequence
    axis per (batch, channel), biased variance, affine."""
    mean = jnp.mean(a, axis=1, keepdims=True)
    var = jnp.mean((a - mean) ** 2, axis=1, keepdims=True)
    return (a - mean) * lax.rsqrt(var + EPS) * gamma[:, None, :] + beta[:, None, :]


def encoder_layer_kernel(x_ref, slab_ref, vecs_ref, o_ref):
    B, N, E = x_ref.shape
    H, D, FF = HEAD_NUM, QKV_DIM, FF_HID
    BN = B * N

    x3 = x_ref[...]                                   # (B, N, E) f32
    x2 = x3.reshape(BN, E)                            # leading-dim merge (no-op)

    # ---- unpack parameters (static slices of the resident VMEM slab) -------
    wqkv = slab_ref[R_QKV:R_QKV + H * E, 0:3 * D].reshape(H, E, 3 * D)   # bf16
    wc = slab_ref[R_WC:R_WC + H * D, 0:E].reshape(H, D, E)               # bf16
    w1 = slab_ref[R_W1:R_W1 + E, 0:FF]                                   # bf16
    w2 = slab_ref[R_W2:R_W2 + FF, 0:E]                                   # bf16
    bc = vecs_ref[0:1, 0:E]
    b1 = vecs_ref[1:2, 0:FF]
    b2 = vecs_ref[2:3, 0:E]
    g1 = vecs_ref[3:4, 0:E]
    be1 = vecs_ref[4:5, 0:E]
    g2 = vecs_ref[5:6, 0:E]
    be2 = vecs_ref[6:7, 0:E]

    # ---- fused, head-batched Q|K|V projection (scale folded into Q cols) ---
    x_b = jnp.broadcast_to(x2.astype(jnp.bfloat16), (H, BN, E))
    qkv = lax.dot_general(x_b, wqkv, (((2,), (1,)), ((0,), (0,))),
                          preferred_element_type=jnp.float32)            # (H, BN, 3D)
    qkv = qkv.astype(jnp.bfloat16)
    qb = qkv[:, :, 0:D].reshape(H * B, N, D)          # per-(head,batch) blocks
    kb = qkv[:, :, D:2 * D].reshape(H * B, N, D)
    vb = qkv[:, :, 2 * D:3 * D].reshape(H * B, N, D)

    # ---- attention, batched over the merged (head, batch) dim --------------
    s = lax.dot_general(qb, kb, (((2,), (2,)), ((0,), (0,))),
                        preferred_element_type=jnp.float32)              # (H*B, N, N)
    s = s - jnp.max(s, axis=-1, keepdims=True)        # stable softmax (f32)
    p = jnp.exp(s)
    p = p * pl.reciprocal(jnp.sum(p, axis=-1, keepdims=True), approx=True)
    o = lax.dot_general(p.astype(jnp.bfloat16), vb, (((2,), (1,)), ((0,), (0,))),
                        preferred_element_type=jnp.float32)              # (H*B, N, D)

    # ---- multi-head combine: sum_h o_h @ Wc_h  (no concatenate) ------------
    o_h = o.reshape(H, BN, D).astype(jnp.bfloat16)
    mh = lax.dot_general(o_h, wc, (((2,), (1,)), ((0,), (0,))),
                         preferred_element_type=jnp.float32)             # (H, BN, E)
    mh = jnp.sum(mh, axis=0) + bc                                        # (BN, E)

    # ---- Add & InstanceNorm #1 ----------------------------------------------
    out1 = _instance_norm(x3 + mh.reshape(B, N, E), g1, be1)             # (B, N, E)

    # ---- feed-forward --------------------------------------------------------
    out1_2d = out1.reshape(BN, E)
    h1 = jnp.maximum(
        jnp.dot(out1_2d.astype(jnp.bfloat16), w1,
                preferred_element_type=jnp.float32) + b1, 0.0)           # (BN, FF)
    ff = jnp.dot(h1.astype(jnp.bfloat16), w2,
                 preferred_element_type=jnp.float32) + b2                # (BN, E)

    # ---- Add & InstanceNorm #2 -----------------------------------------------
    out3 = _instance_norm(out1 + ff.reshape(B, N, E), g2, be2)
    o_ref[...] = out3.astype(o_ref.dtype)


def pack_params(p):
    """Fold scale into Wq, pack all matmul weights into one bf16 slab and all
    small vectors into one f32 table.  Done once, outside the kernel."""
    H, D, E, FF = HEAD_NUM, QKV_DIM, EMB, FF_HID
    scale = 1.0 / (D ** 0.5)
    wq = p["Wq"].reshape(E, H, D).transpose(1, 0, 2) * scale     # (H, E, D)
    wk = p["Wk"].reshape(E, H, D).transpose(1, 0, 2)
    wv = p["Wv"].reshape(E, H, D).transpose(1, 0, 2)
    wqkv_h = jnp.concatenate([wq, wk, wv], axis=-1)              # (H, E, 3D)

    slab = jnp.zeros((SLAB_ROWS, SLAB_LANES), jnp.float32)
    slab = slab.at[R_QKV:R_QKV + H * E, 0:3 * D].set(wqkv_h.reshape(H * E, 3 * D))
    slab = slab.at[R_WC:R_WC + H * D, 0:E].set(p["Wc"])
    slab = slab.at[R_W1:R_W1 + E, 0:FF].set(p["W1"])
    slab = slab.at[R_W2:R_W2 + FF, 0:E].set(p["W2"])
    slab = slab.astype(jnp.bfloat16)

    vecs = jnp.zeros((8, SLAB_LANES), jnp.float32)
    vecs = vecs.at[0, 0:E].set(p["bc"][0])
    vecs = vecs.at[1, 0:FF].set(p["b1"][0])
    vecs = vecs.at[2, 0:E].set(p["b2"][0])
    vecs = vecs.at[3, 0:E].set(p["gamma1"][0])
    vecs = vecs.at[4, 0:E].set(p["beta1"][0])
    vecs = vecs.at[5, 0:E].set(p["gamma2"][0])
    vecs = vecs.at[6, 0:E].set(p["beta2"][0])
    return slab, vecs


def encoder_layer(x, slab, vecs):
    """x: (B, N, E) f32.  slab/vecs: packed parameters from pack_params()."""
    B, N, E = x.shape
    H, D, FF = HEAD_NUM, QKV_DIM, FF_HID
    BN = B * N
    flops = (2 * BN * E * 3 * H * D          # fused QKV projection
             + 2 * (H * B) * N * N * D * 2   # scores + p@v
             + 2 * BN * (H * D) * E          # multi-head combine
             + 2 * BN * E * FF * 2)          # feed-forward
    cost = pl.CostEstimate(
        flops=flops,
        transcendentals=(H * B) * N * N,
        bytes_accessed=(x.size * 4 + slab.size * 2 + vecs.size * 4 + BN * E * 4))

    vmem = lambda: pl.BlockSpec(memory_space=pltpu.MemorySpace.VMEM)
    return pl.pallas_call(
        encoder_layer_kernel,
        out_shape=jax.ShapeDtypeStruct((B, N, E), x.dtype),
        in_specs=[vmem(), vmem(), vmem()],
        out_specs=vmem(),
        cost_estimate=cost,
    )(x, slab, vecs)


# ---------------------- pure-JAX reference (for checking) -------------------
def encoder_layer_ref(x, p):
    B, N, E = x.shape
    q = (x @ p["Wq"]).reshape(B, N, HEAD_NUM, QKV_DIM).transpose(0, 2, 1, 3)
    k = (x @ p["Wk"]).reshape(B, N, HEAD_NUM, QKV_DIM).transpose(0, 2, 1, 3)
    v = (x @ p["Wv"]).reshape(B, N, HEAD_NUM, QKV_DIM).transpose(0, 2, 1, 3)
    s = jnp.einsum("bhnd,bhmd->bhnm", q, k) / (QKV_DIM ** 0.5)
    w = jax.nn.softmax(s, axis=-1)
    o = jnp.einsum("bhnm,bhmd->bhnd", w, v)
    out_concat = o.transpose(0, 2, 1, 3).reshape(B, N, HEAD_NUM * QKV_DIM)
    mh = out_concat @ p["Wc"] + p["bc"][0]

    def inorm(a, g, b):
        mean = jnp.mean(a, axis=1, keepdims=True)
        var = jnp.mean((a - mean) ** 2, axis=1, keepdims=True)
        return (a - mean) / jnp.sqrt(var + EPS) * g[0] + b[0]

    out1 = inorm(x + mh, p["gamma1"], p["beta1"])
    ff = jnp.maximum(out1 @ p["W1"] + p["b1"][0], 0.0) @ p["W2"] + p["b2"][0]
    return inorm(out1 + ff, p["gamma2"], p["beta2"])


def init_params(key):
    ks = jax.random.split(key, 8)
    HD = HEAD_NUM * QKV_DIM
    scale = 0.1
    return {
        "Wq": scale * jax.random.normal(ks[0], (EMB, HD), jnp.float32),
        "Wk": scale * jax.random.normal(ks[1], (EMB, HD), jnp.float32),
        "Wv": scale * jax.random.normal(ks[2], (EMB, HD), jnp.float32),
        "Wc": scale * jax.random.normal(ks[3], (HD, EMB), jnp.float32),
        "bc": scale * jax.random.normal(ks[4], (1, EMB), jnp.float32),
        "W1": scale * jax.random.normal(ks[5], (EMB, FF_HID), jnp.float32),
        "b1": scale * jax.random.normal(ks[6], (1, FF_HID), jnp.float32),
        "W2": scale * jax.random.normal(ks[7], (FF_HID, EMB), jnp.float32),
        "b2": jnp.zeros((1, EMB), jnp.float32),
        # nn.InstanceNorm1d affine params init to ones / zeros
        "gamma1": jnp.ones((1, EMB), jnp.float32),
        "beta1": jnp.zeros((1, EMB), jnp.float32),
        "gamma2": jnp.ones((1, EMB), jnp.float32),
        "beta2": jnp.zeros((1, EMB), jnp.float32),
    }


if __name__ == "__main__":
    key = jax.random.PRNGKey(0)
    kx, kp = jax.random.split(key)
    x = jax.random.normal(kx, (BATCH, SEQ, EMB), jnp.float32)
    params = init_params(kp)
    slab, vecs = pack_params(params)

    out = encoder_layer(x, slab, vecs)
    out = jax.block_until_ready(out)

    ref = encoder_layer_ref(x, params)
    assert out.shape == (BATCH, SEQ, EMB)
    err = jnp.max(jnp.abs(out - ref))
    # Tolerance covers bf16 matmul operands (f32 accumulation) and the EUP
    # approximate reciprocal in the softmax denominator; InstanceNorm's 1/std
    # over only N=8 samples can amplify that rounding a few-fold.
    assert jnp.allclose(out, ref, atol=3e-2, rtol=3e-2), f"max err {err}"
    print("KERNEL_OK")
</pallas_src>

<mosaic_0001>
module attributes {stable_mosaic.version = 11 : i64} {
  func.func @encoder_layer_kernel(%arg0: memref<2x8x32xf32, #tpu.memory_space<vmem>>, %arg1: memref<256x64xbf16, #tpu.memory_space<vmem>>, %arg2: memref<8x64xf32, #tpu.memory_space<vmem>>, %arg3: memref<2x8x32xf32, #tpu.memory_space<vmem>>) attributes {dimension_semantics = [], scalar_prefetch = 0 : i64, scratch_operands = 0 : i64, tpu.core_type = #tpu.core_type<tc>} {
    %c0 = arith.constant 0 : index
    %c0_0 = arith.constant 0 : index
    %c0_1 = arith.constant 0 : index
    %0 = vector.load %arg0[%c0, %c0_0, %c0_1] : memref<2x8x32xf32, #tpu.memory_space<vmem>>, vector<2x8x32xf32>
    %1 = vector.shape_cast %0 : vector<2x8x32xf32> to vector<16x32xf32>
    %c0_2 = arith.constant 0 : index
    %c0_3 = arith.constant 0 : index
    %2 = vector.load %arg1[%c0_2, %c0_3] : memref<256x64xbf16, #tpu.memory_space<vmem>>, vector<128x24xbf16>
    %3 = vector.shape_cast %2 : vector<128x24xbf16> to vector<4x32x24xbf16>
    %c128 = arith.constant 128 : index
    %c0_4 = arith.constant 0 : index
    %4 = vector.load %arg1[%c128, %c0_4] : memref<256x64xbf16, #tpu.memory_space<vmem>>, vector<32x32xbf16>
    %5 = vector.shape_cast %4 : vector<32x32xbf16> to vector<4x8x32xbf16>
    %c160 = arith.constant 160 : index
    %c0_5 = arith.constant 0 : index
    %6 = vector.load %arg1[%c160, %c0_5] : memref<256x64xbf16, #tpu.memory_space<vmem>>, vector<32x64xbf16>
    %c192 = arith.constant 192 : index
    %c0_6 = arith.constant 0 : index
    %7 = vector.load %arg1[%c192, %c0_6] : memref<256x64xbf16, #tpu.memory_space<vmem>>, vector<64x32xbf16>
    %c0_7 = arith.constant 0 : index
    %c0_8 = arith.constant 0 : index
    %8 = vector.load %arg2[%c0_7, %c0_8] : memref<8x64xf32, #tpu.memory_space<vmem>>, vector<1x32xf32>
    %c1 = arith.constant 1 : index
    %c0_9 = arith.constant 0 : index
    %9 = vector.load %arg2[%c1, %c0_9] : memref<8x64xf32, #tpu.memory_space<vmem>>, vector<1x64xf32>
    %c2 = arith.constant 2 : index
    %c0_10 = arith.constant 0 : index
    %10 = vector.load %arg2[%c2, %c0_10] : memref<8x64xf32, #tpu.memory_space<vmem>>, vector<1x32xf32>
    %c3 = arith.constant 3 : index
    %c0_11 = arith.constant 0 : index
    %11 = vector.load %arg2[%c3, %c0_11] : memref<8x64xf32, #tpu.memory_space<vmem>>, vector<1x32xf32>
    %c4 = arith.constant 4 : index
    %c0_12 = arith.constant 0 : index
    %12 = vector.load %arg2[%c4, %c0_12] : memref<8x64xf32, #tpu.memory_space<vmem>>, vector<1x32xf32>
    %c5 = arith.constant 5 : index
    %c0_13 = arith.constant 0 : index
    %13 = vector.load %arg2[%c5, %c0_13] : memref<8x64xf32, #tpu.memory_space<vmem>>, vector<1x32xf32>
    %c6 = arith.constant 6 : index
    %c0_14 = arith.constant 0 : index
    %14 = vector.load %arg2[%c6, %c0_14] : memref<8x64xf32, #tpu.memory_space<vmem>>, vector<1x32xf32>
    %15 = arith.truncf %1 : vector<16x32xf32> to vector<16x32xbf16>
    %16 = vector.shape_cast %15 : vector<16x32xbf16> to vector<1x16x32xbf16>
    %17 = vector.broadcast %16 : vector<1x16x32xbf16> to vector<4x16x32xbf16>
    %cst = arith.constant dense<0.000000e+00> : vector<4x16x24xf32>
    %18 = tpu.matmul %17, %3, %cst {dimension_numbers = #tpu.dot_dimension_numbers<[2], [1], [1], [2], [0, 0, 0, 1, 1, 2], [0], [0]>} : vector<4x16x32xbf16>, vector<4x32x24xbf16>, vector<4x16x24xf32> -> vector<4x16x24xf32>
    %19 = arith.truncf %18 : vector<4x16x24xf32> to vector<4x16x24xbf16>
    %20 = vector.extract_strided_slice %19 {offsets = [0, 0, 0], sizes = [4, 16, 8], strides = [1, 1, 1]} : vector<4x16x24xbf16> to vector<4x16x8xbf16>
    %21 = vector.shape_cast %20 : vector<4x16x8xbf16> to vector<8x8x8xbf16>
    %22 = vector.extract_strided_slice %19 {offsets = [0, 0, 8], sizes = [4, 16, 8], strides = [1, 1, 1]} : vector<4x16x24xbf16> to vector<4x16x8xbf16>
    %23 = vector.shape_cast %22 : vector<4x16x8xbf16> to vector<8x8x8xbf16>
    %24 = vector.extract_strided_slice %19 {offsets = [0, 0, 16], sizes = [4, 16, 8], strides = [1, 1, 1]} : vector<4x16x24xbf16> to vector<4x16x8xbf16>
    %25 = vector.shape_cast %24 : vector<4x16x8xbf16> to vector<8x8x8xbf16>
    %cst_15 = arith.constant dense<0.000000e+00> : vector<8x8x8xf32>
    %26 = tpu.matmul %21, %23, %cst_15 {dimension_numbers = #tpu.dot_dimension_numbers<[2], [2], [1], [1], [0, 0, 0, 1, 1, 1], [0], [0]>} : vector<8x8x8xbf16>, vector<8x8x8xbf16>, vector<8x8x8xf32> -> vector<8x8x8xf32>
    %cst_16 = arith.constant dense<0xFF800000> : vector<8x8xf32>
    %27 = vector.multi_reduction <maximumf>, %26, %cst_16 [2] : vector<8x8x8xf32> to vector<8x8xf32>
    %28 = vector.shape_cast %27 : vector<8x8xf32> to vector<8x8x1xf32>
    %29 = vector.broadcast %28 : vector<8x8x1xf32> to vector<8x8x8xf32>
    %30 = arith.subf %26, %29 : vector<8x8x8xf32>
    %31 = math.exp %30 : vector<8x8x8xf32>
    %cst_17 = arith.constant dense<0.000000e+00> : vector<8x8xf32>
    %32 = vector.multi_reduction <add>, %31, %cst_17 [2] : vector<8x8x8xf32> to vector<8x8xf32>
    %33 = vector.shape_cast %32 : vector<8x8xf32> to vector<8x8x1xf32>
    %34 = tpu.reciprocal %33 {approx = true} : vector<8x8x1xf32> -> vector<8x8x1xf32>
    %35 = vector.broadcast %34 : vector<8x8x1xf32> to vector<8x8x8xf32>
    %36 = arith.mulf %31, %35 : vector<8x8x8xf32>
    %37 = arith.truncf %36 : vector<8x8x8xf32> to vector<8x8x8xbf16>
    %cst_18 = arith.constant dense<0.000000e+00> : vector<8x8x8xf32>
    %38 = tpu.matmul %37, %25, %cst_18 {dimension_numbers = #tpu.dot_dimension_numbers<[2], [1], [1], [2], [0, 0, 0, 1, 1, 2], [0], [0]>} : vector<8x8x8xbf16>, vector<8x8x8xbf16>, vector<8x8x8xf32> -> vector<8x8x8xf32>
    %39 = vector.shape_cast %38 : vector<8x8x8xf32> to vector<4x16x8xf32>
    %40 = arith.truncf %39 : vector<4x16x8xf32> to vector<4x16x8xbf16>
    %cst_19 = arith.constant dense<0.000000e+00> : vector<4x16x32xf32>
    %41 = tpu.matmul %40, %5, %cst_19 {dimension_numbers = #tpu.dot_dimension_numbers<[2], [1], [1], [2], [0, 0, 0, 1, 1, 2], [0], [0]>} : vector<4x16x8xbf16>, vector<4x8x32xbf16>, vector<4x16x32xf32> -> vector<4x16x32xf32>
    %cst_20 = arith.constant dense<0.000000e+00> : vector<16x32xf32>
    %42 = vector.multi_reduction <add>, %41, %cst_20 [0] : vector<4x16x32xf32> to vector<16x32xf32>
    %43 = vector.broadcast %8 : vector<1x32xf32> to vector<16x32xf32>
    %44 = arith.addf %42, %43 : vector<16x32xf32>
    %45 = vector.shape_cast %44 : vector<16x32xf32> to vector<2x8x32xf32>
    %46 = arith.addf %0, %45 : vector<2x8x32xf32>
    %cst_21 = arith.constant dense<0.000000e+00> : vector<2x32xf32>
    %47 = vector.multi_reduction <add>, %46, %cst_21 [1] : vector<2x8x32xf32> to vector<2x32xf32>
    %48 = vector.shape_cast %47 : vector<2x32xf32> to vector<2x1x32xf32>
    %cst_22 = arith.constant 8.000000e+00 : f32
    %49 = vector.broadcast %cst_22 : f32 to vector<2x1x32xf32>
    %50 = arith.divf %48, %49 : vector<2x1x32xf32>
    %51 = vector.broadcast %50 : vector<2x1x32xf32> to vector<2x8x32xf32>
    %52 = arith.subf %46, %51 : vector<2x8x32xf32>
    %53 = arith.mulf %52, %52 : vector<2x8x32xf32>
    %cst_23 = arith.constant dense<0.000000e+00> : vector<2x32xf32>
    %54 = vector.multi_reduction <add>, %53, %cst_23 [1] : vector<2x8x32xf32> to vector<2x32xf32>
    %55 = vector.shape_cast %54 : vector<2x32xf32> to vector<2x1x32xf32>
    %cst_24 = arith.constant 8.000000e+00 : f32
    %56 = vector.broadcast %cst_24 : f32 to vector<2x1x32xf32>
    %57 = arith.divf %55, %56 : vector<2x1x32xf32>
    %58 = vector.broadcast %50 : vector<2x1x32xf32> to vector<2x8x32xf32>
    %59 = arith.subf %46, %58 : vector<2x8x32xf32>
    %cst_25 = arith.constant 9.99999974E-6 : f32
    %60 = vector.broadcast %cst_25 : f32 to vector<2x1x32xf32>
    %61 = arith.addf %57, %60 : vector<2x1x32xf32>
    %62 = math.rsqrt %61 : vector<2x1x32xf32>
    %63 = vector.broadcast %62 : vector<2x1x32xf32> to vector<2x8x32xf32>
    %64 = arith.mulf %59, %63 : vector<2x8x32xf32>
    %65 = vector.shape_cast %11 : vector<1x32xf32> to vector<1x1x32xf32>
    %66 = vector.broadcast %65 : vector<1x1x32xf32> to vector<2x8x32xf32>
    %67 = arith.mulf %64, %66 : vector<2x8x32xf32>
    %68 = vector.shape_cast %12 : vector<1x32xf32> to vector<1x1x32xf32>
    %69 = vector.broadcast %68 : vector<1x1x32xf32> to vector<2x8x32xf32>
    %70 = arith.addf %67, %69 : vector<2x8x32xf32>
    %71 = vector.shape_cast %70 : vector<2x8x32xf32> to vector<16x32xf32>
    %72 = arith.truncf %71 : vector<16x32xf32> to vector<16x32xbf16>
    %cst_26 = arith.constant dense<0.000000e+00> : vector<16x64xf32>
    %73 = tpu.matmul %72, %6, %cst_26 {dimension_numbers = #tpu.dot_dimension_numbers<[1], [0], [0], [1], [0, 0, 1, 1], [], []>} : vector<16x32xbf16>, vector<32x64xbf16>, vector<16x64xf32> -> vector<16x64xf32>
    %74 = vector.broadcast %9 : vector<1x64xf32> to vector<16x64xf32>
    %75 = arith.addf %73, %74 : vector<16x64xf32>
    %cst_27 = arith.constant 0.000000e+00 : f32
    %76 = vector.broadcast %cst_27 : f32 to vector<16x64xf32>
    %77 = arith.maximumf %75, %76 : vector<16x64xf32>
    %78 = arith.truncf %77 : vector<16x64xf32> to vector<16x64xbf16>
    %cst_28 = arith.constant dense<0.000000e+00> : vector<16x32xf32>
    %79 = tpu.matmul %78, %7, %cst_28 {dimension_numbers = #tpu.dot_dimension_numbers<[1], [0], [0], [1], [0, 0, 1, 1], [], []>} : vector<16x64xbf16>, vector<64x32xbf16>, vector<16x32xf32> -> vector<16x32xf32>
    %80 = vector.broadcast %10 : vector<1x32xf32> to vector<16x32xf32>
    %81 = arith.addf %79, %80 : vector<16x32xf32>
    %82 = vector.shape_cast %81 : vector<16x32xf32> to vector<2x8x32xf32>
    %83 = arith.addf %70, %82 : vector<2x8x32xf32>
    %cst_29 = arith.constant dense<0.000000e+00> : vector<2x32xf32>
    %84 = vector.multi_reduction <add>, %83, %cst_29 [1] : vector<2x8x32xf32> to vector<2x32xf32>
    %85 = vector.shape_cast %84 : vector<2x32xf32> to vector<2x1x32xf32>
    %cst_30 = arith.constant 8.000000e+00 : f32
    %86 = vector.broadcast %cst_30 : f32 to vector<2x1x32xf32>
    %87 = arith.divf %85, %86 : vector<2x1x32xf32>
    %88 = vector.broadcast %87 : vector<2x1x32xf32> to vector<2x8x32xf32>
    %89 = arith.subf %83, %88 : vector<2x8x32xf32>
    %90 = arith.mulf %89, %89 : vector<2x8x32xf32>
    %cst_31 = arith.constant dense<0.000000e+00> : vector<2x32xf32>
    %91 = vector.multi_reduction <add>, %90, %cst_31 [1] : vector<2x8x32xf32> to vector<2x32xf32>
    %92 = vector.shape_cast %91 : vector<2x32xf32> to vector<2x1x32xf32>
    %cst_32 = arith.constant 8.000000e+00 : f32
    %93 = vector.broadcast %cst_32 : f32 to vector<2x1x32xf32>
    %94 = arith.divf %92, %93 : vector<2x1x32xf32>
    %95 = vector.broadcast %87 : vector<2x1x32xf32> to vector<2x8x32xf32>
    %96 = arith.subf %83, %95 : vector<2x8x32xf32>
    %cst_33 = arith.constant 9.99999974E-6 : f32
    %97 = vector.broadcast %cst_33 : f32 to vector<2x1x32xf32>
    %98 = arith.addf %94, %97 : vector<2x1x32xf32>
    %99 = math.rsqrt %98 : vector<2x1x32xf32>
    %100 = vector.broadcast %99 : vector<2x1x32xf32> to vector<2x8x32xf32>
    %101 = arith.mulf %96, %100 : vector<2x8x32xf32>
    %102 = vector.shape_cast %13 : vector<1x32xf32> to vector<1x1x32xf32>
    %103 = vector.broadcast %102 : vector<1x1x32xf32> to vector<2x8x32xf32>
    %104 = arith.mulf %101, %103 : vector<2x8x32xf32>
    %105 = vector.shape_cast %14 : vector<1x32xf32> to vector<1x1x32xf32>
    %106 = vector.broadcast %105 : vector<1x1x32xf32> to vector<2x8x32xf32>
    %107 = arith.addf %104, %106 : vector<2x8x32xf32>
    %c0_34 = arith.constant 0 : index
    %c0_35 = arith.constant 0 : index
    %c0_36 = arith.constant 0 : index
    %108 = vector.load %arg3[%c0_34, %c0_35, %c0_36] : memref<2x8x32xf32, #tpu.memory_space<vmem>>, vector<2x8x32xf32>
    tpu.vector_store %arg3[%c0_34, %c0_35, %c0_36], %107 {strides = array<i32>} : memref<2x8x32xf32, #tpu.memory_space<vmem>>, vector<2x8x32xf32>,
    return
  }
}

</mosaic_0001>

<llo_original>
// kernel: tpu_custom_call.1
$region0: #{tpu_custom_call.1}
  #allocation0 [shape = 'u32[]', space=smem, size = 0x4, offset = 0x4, fixed_abs, tag = 'smem constant byte address 0x4 - core index']
  #allocation1 [shape = 'u32[144,128]{1,0:T(1,128)}', space=vmem, size = 0x12000, scoped, tag = 'internal scratch']
  %s0 = inlined_call_operand.vmem [shape: f32[2,8,32], index: 0, kind: input, shape index: {}]
  %s1 = inlined_call_operand.vmem [shape: bf16[256,64], index: 1, kind: input, shape index: {}]
  %s2 = inlined_call_operand.vmem [shape: f32[8,64], index: 2, kind: input, shape index: {}]
  %s3 = inlined_call_operand.hbm [shape: f32[2,8,32], index: 3, kind: output, shape index: {}]
  %s4 = sld [smem:[#allocation0]]
  $region22: #{tpu_custom_call.1} parent=0
    _
  %s6 = ssub.s32 1, %s4
  %s7 = scalar_select 0, %s6, %s4
  $region1: #{tpu_custom_call.1} parent=0
    #allocation2 [shape = 'u8[8192]{0}', space=vmem, size = 0x2000, scoped, tag = 'output window, operand 0, single buffered']
    #allocation3 [shape = 's32[1]{0}', space=sflag, size = 0x4, scoped, tag = 'scoped memory for tpu_custom_call.1']
    %8 = vsyncpa [#allocation3], 0
    // Predicated region
    $region2: #{tpu_custom_call.1} parent=1 // pred_check
      _
    $region3: #{tpu_custom_call.1} parent=1 // pred_check_branch
      %10 = sbr.rel (0) target = $region5
    $region4: #{tpu_custom_call.1} parent=1 // pred_region
      _
    $region5: #{tpu_custom_call.1} parent=1 // pred_fallthru
      _
    // Predicated region
    $region6: #{tpu_custom_call.1} parent=1 // pred_check
      _
    $region7: #{tpu_custom_call.1} parent=1 // pred_check_branch
      %12 = sbr.rel (0) target = $region9
    $region8: #{tpu_custom_call.1} parent=1 // pred_region
      _
    $region9: #{tpu_custom_call.1} parent=1 // pred_fallthru
      _
    // Predicated region
    $region10: #{tpu_custom_call.1} parent=1 // pred_check
      _
    $region11: #{tpu_custom_call.1} parent=1 // pred_check_branch
      %14 = sbr.rel (0) target = $region13
    $region12: #{tpu_custom_call.1} parent=1 // pred_region
      _
    $region13: #{tpu_custom_call.1} parent=1 // pred_fallthru
      _
    %v16 = vld [vmem:[%s0] sm:$0xff]
    %v17 = vld [vmem:[%s0 + $0x8] sm:$0xff]
    %v18 = vld [vmem:[%s1] sm:$0xf]
    %v19 = vld [vmem:[%s1 + $0x4] sm:$0xf]
    %v20 = vld [vmem:[%s1 + $0x8] sm:$0xf]
    %v21 = vld [vmem:[%s1 + $0xc] sm:$0xf]
    %v22 = vld [vmem:[%s1 + $0x10] sm:$0xf]
    %v23 = vld [vmem:[%s1 + $0x14] sm:$0xf]
    %v24 = vld [vmem:[%s1 + $0x18] sm:$0xf]
    %v25 = vld [vmem:[%s1 + $0x1c] sm:$0xf]
    %v26 = vld [vmem:[%s1 + $0x20] sm:$0xf]
    %v27 = vld [vmem:[%s1 + $0x24] sm:$0xf]
    %v28 = vld [vmem:[%s1 + $0x28] sm:$0xf]
    %v29 = vld [vmem:[%s1 + $0x2c] sm:$0xf]
    %v30 = vld [vmem:[%s1 + $0x30] sm:$0xf]
    %v31 = vld [vmem:[%s1 + $0x34] sm:$0xf]
    %v32 = vld [vmem:[%s1 + $0x38] sm:$0xf]
    %v33 = vld [vmem:[%s1 + $0x3c] sm:$0xf]
    %v34 = vld [vmem:[%s1 + $0x40] sm:$0xf]
    %v35 = vld [vmem:[%s1 + $0x44] sm:$0xf]
    %v36 = vld [vmem:[%s1 + $0x48] sm:$0xf]
    %v37 = vld [vmem:[%s1 + $0x4c] sm:$0xf]
    %v38 = vld [vmem:[%s1 + $0x50] sm:$0xf]
    %v39 = vld [vmem:[%s1 + $0x54] sm:$0xf]
    %v40 = vld [vmem:[%s1 + $0x58] sm:$0xf]
    %v41 = vld [vmem:[%s1 + $0x5c] sm:$0xf]
    %v42 = vld [vmem:[%s1 + $0x60] sm:$0xf]
    %v43 = vld [vmem:[%s1 + $0x64] sm:$0xf]
    %v44 = vld [vmem:[%s1 + $0x68] sm:$0xf]
    %v45 = vld [vmem:[%s1 + $0x6c] sm:$0xf]
    %v46 = vld [vmem:[%s1 + $0x70] sm:$0xf]
    %v47 = vld [vmem:[%s1 + $0x74] sm:$0xf]
    %v48 = vld [vmem:[%s1 + $0x78] sm:$0xf]
    %v49 = vld [vmem:[%s1 + $0x7c] sm:$0xf]
    %v50 = vld [vmem:[%s2] sm:$0x1]
    %v51 = vld [vmem:[%s2 + $0x1] sm:$0x1]
    %v52 = vld [vmem:[%s2 + $0x2] sm:$0x1]
    %v53 = vld [vmem:[%s2 + $0x3] sm:$0x1]
    %v54 = vld [vmem:[%s2 + $0x4] sm:$0x1]
    %v55 = vld [vmem:[%s2 + $0x5] sm:$0x1]
    %v56 = vld [vmem:[%s2 + $0x6] sm:$0x1]
    %v57 = vpack.c.bf16 %v17, %v16
    %v62 = vunpack.c.l.b16 %v18
    %v63 = vunpack.c.l.b16 %v19
    %v64 = vunpack.c.l.b16 %v20
    %v65 = vunpack.c.l.b16 %v21
    %v66 = vpack.c.b16 %v63, %v62
    %v67 = vpack.c.b16 %v65, %v64
    %vm70 = vcmask 261120
    %v72 = vsel %vm70, %v57, 0
    %74 = vmatprep.subr.bf16.mxu0 0
    %75 = vmatpush1.bf16.msra.mxu0 0
    %76 = vmatprep.subr.bf16.mxu0 0
    %77 = vmatpush1.bf16.msra.mxu0 0
    %78 = vmatprep.subr.bf16.mxu0 0
    %79 = vmatpush1.bf16.msra.mxu0 0
    %80 = vmatprep.subr.bf16.mxu0 0
    %81 = vmatpush1.bf16.msra.mxu0 0
    %82 = vmatprep.subr.bf16.mxu0 0
    %83 = vmatpush1.bf16.msra.mxu0 0
    %84 = vmatprep.subr.bf16.mxu0 0
    %85 = vmatpush1.bf16.msra.mxu0 0
    %86 = vmatprep.subr.bf16.mxu0 0
    %87 = vmatpush1.bf16.msra.mxu0 %v67
    %88 = vmatprep.subr.bf16.mxu0 0
    %89 = vmatpush1.bf16.msra.mxu0 %v66
    %90 = vmatprep.subr.bf16.mxu0 0
    %91 = vmatpush2.bf16.msra.mxu0 0
    %92 = vmatprep.subr.bf16.mxu0 0
    %93 = vmatpush2.bf16.msra.mxu0 0
    %94 = vmatprep.subr.bf16.mxu0 0
    %95 = vmatpush2.bf16.msra.mxu0 0
    %96 = vmatprep.subr.bf16.mxu0 0
    %97 = vmatpush2.bf16.msra.mxu0 0
    %98 = vmatprep.subr.bf16.mxu0 0
    %99 = vmatpush2.bf16.msra.mxu0 0
    %100 = vmatprep.subr.bf16.mxu0 0
    %101 = vmatpush2.bf16.msra.mxu0 0
    %102 = vmatprep.subr.bf16.mxu0 0
    %103 = vmatpush2.bf16.msra.mxu0 0
    %104 = vmatprep.subr.bf16.mxu0 0
    %105 = vmatpush2.bf16.msra.mxu0 0
    %106 = vmatprep.mubr.bf16.mxu0 0
    %107 = vmatmul.mubr.bf16.gmra.mxu0 %v72
    %v108 = vpop.f32.mrf.mxu0
    %v109 = vadd.f32 0.0, %v108
    %v110 = vpop.f32.mrf.mxu0
    %v111 = vpop.f32.mrf.mxu0
    %v112 = vadd.f32 0.0, %v111
    %v113 = vpop.f32.mrf.mxu0
    %114 = vdwg.mxu0
    %v119 = vunpack.c.l.b16 %v22
    %v120 = vunpack.c.l.b16 %v23
    %v121 = vunpack.c.l.b16 %v24
    %v122 = vunpack.c.l.b16 %v25
    %v123 = vpack.c.b16 %v120, %v119
    %v124 = vpack.c.b16 %v122, %v121
    %127 = vmatprep.subr.bf16.mxu0 0
    %128 = vmatpush1.bf16.msra.mxu0 0
    %129 = vmatprep.subr.bf16.mxu0 0
    %130 = vmatpush1.bf16.msra.mxu0 0
    %131 = vmatprep.subr.bf16.mxu0 0
    %132 = vmatpush1.bf16.msra.mxu0 0
    %133 = vmatprep.subr.bf16.mxu0 0
    %134 = vmatpush1.bf16.msra.mxu0 0
    %135 = vmatprep.subr.bf16.mxu0 0
    %136 = vmatpush1.bf16.msra.mxu0 0
    %137 = vmatprep.subr.bf16.mxu0 0
    %138 = vmatpush1.bf16.msra.mxu0 0
    %139 = vmatprep.subr.bf16.mxu0 0
    %140 = vmatpush1.bf16.msra.mxu0 %v124
    %141 = vmatprep.subr.bf16.mxu0 0
    %142 = vmatpush1.bf16.msra.mxu0 %v123
    %143 = vmatprep.subr.bf16.mxu0 0
    %144 = vmatpush2.bf16.msra.mxu0 0
    %145 = vmatprep.subr.bf16.mxu0 0
    %146 = vmatpush2.bf16.msra.mxu0 0
    %147 = vmatprep.subr.bf16.mxu0 0
    %148 = vmatpush2.bf16.msra.mxu0 0
    %149 = vmatprep.subr.bf16.mxu0 0
    %150 = vmatpush2.bf16.msra.mxu0 0
    %151 = vmatprep.subr.bf16.mxu0 0
    %152 = vmatpush2.bf16.msra.mxu0 0
    %153 = vmatprep.subr.bf16.mxu0 0
    %154 = vmatpush2.bf16.msra.mxu0 0
    %155 = vmatprep.subr.bf16.mxu0 0
    %156 = vmatpush2.bf16.msra.mxu0 0
    %157 = vmatprep.subr.bf16.mxu0 0
    %158 = vmatpush2.bf16.msra.mxu0 0
    %159 = vmatprep.mubr.bf16.mxu0 0
    %160 = vmatmul.mubr.bf16.gmra.mxu0 %v72
    %v161 = vpop.f32.mrf.mxu0
    %v162 = vadd.f32 0.0, %v161
    %v163 = vpop.f32.mrf.mxu0
    %v164 = vpop.f32.mrf.mxu0
    %v165 = vadd.f32 0.0, %v164
    %v166 = vpop.f32.mrf.mxu0
    %167 = vdwg.mxu0
    %v172 = vunpack.c.l.b16 %v26
    %v173 = vunpack.c.l.b16 %v27
    %v174 = vunpack.c.l.b16 %v28
    %v175 = vunpack.c.l.b16 %v29
    %v176 = vpack.c.b16 %v173, %v172
    %v177 = vpack.c.b16 %v175, %v174
    %180 = vmatprep.subr.bf16.mxu0 0
    %181 = vmatpush1.bf16.msra.mxu0 0
    %182 = vmatprep.subr.bf16.mxu0 0
    %183 = vmatpush1.bf16.msra.mxu0 0
    %184 = vmatprep.subr.bf16.mxu0 0
    %185 = vmatpush1.bf16.msra.mxu0 0
    %186 = vmatprep.subr.bf16.mxu0 0
    %187 = vmatpush1.bf16.msra.mxu0 0
    %188 = vmatprep.subr.bf16.mxu0 0
    %189 = vmatpush1.bf16.msra.mxu0 0
    %190 = vmatprep.subr.bf16.mxu0 0
    %191 = vmatpush1.bf16.msra.mxu0 0
    %192 = vmatprep.subr.bf16.mxu0 0
    %193 = vmatpush1.bf16.msra.mxu0 %v177
    %194 = vmatprep.subr.bf16.mxu0 0
    %195 = vmatpush1.bf16.msra.mxu0 %v176
    %196 = vmatprep.subr.bf16.mxu0 0
    %197 = vmatpush2.bf16.msra.mxu0 0
    %198 = vmatprep.subr.bf16.mxu0 0
    %199 = vmatpush2.bf16.msra.mxu0 0
    %200 = vmatprep.subr.bf16.mxu0 0
    %201 = vmatpush2.bf16.msra.mxu0 0
    %202 = vmatprep.subr.bf16.mxu0 0
    %203 = vmatpush2.bf16.msra.mxu0 0
    %204 = vmatprep.subr.bf16.mxu0 0
    %205 = vmatpush2.bf16.msra.mxu0 0
    %206 = vmatprep.subr.bf16.mxu0 0
    %207 = vmatpush2.bf16.msra.mxu0 0
    %208 = vmatprep.subr.bf16.mxu0 0
    %209 = vmatpush2.bf16.msra.mxu0 0
    %210 = vmatprep.subr.bf16.mxu0 0
    %211 = vmatpush2.bf16.msra.mxu0 0
    %212 = vmatprep.mubr.bf16.mxu0 0
    %213 = vmatmul.mubr.bf16.gmra.mxu0 %v72
    %v214 = vpop.f32.mrf.mxu0
    %v215 = vadd.f32 0.0, %v214
    %v216 = vpop.f32.mrf.mxu0
    %v217 = vpop.f32.mrf.mxu0
    %v218 = vadd.f32 0.0, %v217
    %v219 = vpop.f32.mrf.mxu0
    %220 = vdwg.mxu0
    %v225 = vunpack.c.l.b16 %v30
    %v226 = vunpack.c.l.b16 %v31
    %v227 = vunpack.c.l.b16 %v32
    %v228 = vunpack.c.l.b16 %v33
    %v229 = vpack.c.b16 %v226, %v225
    %v230 = vpack.c.b16 %v228, %v227
    %233 = vmatprep.subr.bf16.mxu0 0
    %234 = vmatpush1.bf16.msra.mxu0 0
    %235 = vmatprep.subr.bf16.mxu0 0
    %236 = vmatpush1.bf16.msra.mxu0 0
    %237 = vmatprep.subr.bf16.mxu0 0
    %238 = vmatpush1.bf16.msra.mxu0 0
    %239 = vmatprep.subr.bf16.mxu0 0
    %240 = vmatpush1.bf16.msra.mxu0 0
    %241 = vmatprep.subr.bf16.mxu0 0
    %242 = vmatpush1.bf16.msra.mxu0 0
    %243 = vmatprep.subr.bf16.mxu0 0
    %244 = vmatpush1.bf16.msra.mxu0 0
    %245 = vmatprep.subr.bf16.mxu0 0
    %246 = vmatpush1.bf16.msra.mxu0 %v230
    %247 = vmatprep.subr.bf16.mxu0 0
    %248 = vmatpush1.bf16.msra.mxu0 %v229
    %249 = vmatprep.subr.bf16.mxu0 0
    %250 = vmatpush2.bf16.msra.mxu0 0
    %251 = vmatprep.subr.bf16.mxu0 0
    %252 = vmatpush2.bf16.msra.mxu0 0
    %253 = vmatprep.subr.bf16.mxu0 0
    %254 = vmatpush2.bf16.msra.mxu0 0
    %255 = vmatprep.subr.bf16.mxu0 0
    %256 = vmatpush2.bf16.msra.mxu0 0
    %257 = vmatprep.subr.bf16.mxu0 0
    %258 = vmatpush2.bf16.msra.mxu0 0
    %259 = vmatprep.subr.bf16.mxu0 0
    %260 = vmatpush2.bf16.msra.mxu0 0
    %261 = vmatprep.subr.bf16.mxu0 0
    %262 = vmatpush2.bf16.msra.mxu0 0
    %263 = vmatprep.subr.bf16.mxu0 0
    %264 = vmatpush2.bf16.msra.mxu0 0
    %265 = vmatprep.mubr.bf16.mxu0 0
    %266 = vmatmul.mubr.bf16.gmra.mxu0 %v72
    %v267 = vpop.f32.mrf.mxu0
    %v268 = vadd.f32 0.0, %v267
    %v269 = vpop.f32.mrf.mxu0
    %v270 = vpop.f32.mrf.mxu0
    %v271 = vadd.f32 0.0, %v270
    %v272 = vpop.f32.mrf.mxu0
    %273 = vdwg.mxu0
    %v274 = vpack.c.bf16 %v112, %v109
    %v275 = vpack.c.bf16 %v165, %v162
    %v276 = vpack.c.bf16 %v218, %v215
    %v277 = vpack.c.bf16 %v271, %v268
    %v282 = vunpack.c.l.b16 %v274
    %v283 = vunpack.c.h.b16 %v274
    %v284 = vunpack.c.l.b16 %v275
    %v285 = vunpack.c.h.b16 %v275
    %v286 = vunpack.c.l.b16 %v276
    %v287 = vunpack.c.h.b16 %v276
    %v288 = vunpack.c.l.b16 %v277
    %v289 = vunpack.c.h.b16 %v277
    %v290 = vpack.c.b16 %v282, %v282
    %v291 = vpack.c.b16 %v283, %v283
    %v292 = vpack.c.b16 %v284, %v284
    %v293 = vpack.c.b16 %v285, %v285
    %v294 = vpack.c.b16 %v286, %v286
    %v295 = vpack.c.b16 %v287, %v287
    %v296 = vpack.c.b16 %v288, %v288
    %v297 = vpack.c.b16 %v289, %v289
    %298 = vrot.lane.b32.xlu0 %v290, 120
    %v299 = vpop.permute.xlu0 %298
    %vm300 = vcmask 64512
    %v302 = vsel %vm300, %v290, 0
    %v305 = vsel %vm300, %v299, 0
    %307 = vmatprep.subr.bf16.mxu0 0
    %308 = vmatpush1.bf16.xpose.msra.mxu0 0
    %309 = vmatprep.subr.bf16.mxu0 0
    %310 = vmatpush1.bf16.xpose.msra.mxu0 0
    %311 = vmatprep.subr.bf16.mxu0 0
    %312 = vmatpush1.bf16.xpose.msra.mxu0 0
    %313 = vmatprep.subr.bf16.mxu0 0
    %314 = vmatpush1.bf16.xpose.msra.mxu0 0
    %315 = vmatprep.subr.bf16.mxu0 0
    %316 = vmatpush1.bf16.xpose.msra.mxu0 0
    %317 = vmatprep.subr.bf16.mxu0 0
    %318 = vmatpush1.bf16.xpose.msra.mxu0 0
    %319 = vmatprep.subr.bf16.mxu0 0
    %320 = vmatpush1.bf16.xpose.msra.mxu0 0
    %321 = vmatprep.subr.bf16.mxu0 0
    %322 = vmatpush1.bf16.xpose.msra.mxu0 %v305
    %323 = vmatprep.subr.bf16.mxu0 0
    %324 = vmatpush2.bf16.xpose.msra.mxu0 0
    %325 = vmatprep.subr.bf16.mxu0 0
    %326 = vmatpush2.bf16.xpose.msra.mxu0 0
    %327 = vmatprep.subr.bf16.mxu0 0
    %328 = vmatpush2.bf16.xpose.msra.mxu0 0
    %329 = vmatprep.subr.bf16.mxu0 0
    %330 = vmatpush2.bf16.xpose.msra.mxu0 0
    %331 = vmatprep.subr.bf16.mxu0 0
    %332 = vmatpush2.bf16.xpose.msra.mxu0 0
    %333 = vmatprep.subr.bf16.mxu0 0
    %334 = vmatpush2.bf16.xpose.msra.mxu0 0
    %335 = vmatprep.subr.bf16.mxu0 0
    %336 = vmatpush2.bf16.xpose.msra.mxu0 0
    %337 = vmatprep.subr.bf16.mxu0 0
    %338 = vmatpush2.bf16.xpose.msra.mxu0 0
    %339 = vmatprep.mubr.bf16.mxu0 0
    %340 = vmatmul.mubr.bf16.gmra.mxu0 %v302
    %v341 = vpop.f32.mrf.mxu0
    %v342 = vadd.f32 0.0, %v341
    %v343 = vpop.f32.mrf.mxu0
    %v344 = vpop.f32.mrf.mxu0
    %v345 = vpop.f32.mrf.mxu0
    %346 = vdwg.mxu0
    %347 = vrot.lane.b32.xlu0 %v291, 120
    %v348 = vpop.permute.xlu0 %347
    %v350 = vsel %vm300, %v291, 0
    %v353 = vsel %vm300, %v348, 0
    %355 = vmatprep.subr.bf16.mxu0 0
    %356 = vmatpush1.bf16.xpose.msra.mxu0 0
    %357 = vmatprep.subr.bf16.mxu0 0
    %358 = vmatpush1.bf16.xpose.msra.mxu0 0
    %359 = vmatprep.subr.bf16.mxu0 0
    %360 = vmatpush1.bf16.xpose.msra.mxu0 0
    %361 = vmatprep.subr.bf16.mxu0 0
    %362 = vmatpush1.bf16.xpose.msra.mxu0 0
    %363 = vmatprep.subr.bf16.mxu0 0
    %364 = vmatpush1.bf16.xpose.msra.mxu0 0
    %365 = vmatprep.subr.bf16.mxu0 0
    %366 = vmatpush1.bf16.xpose.msra.mxu0 0
    %367 = vmatprep.subr.bf16.mxu0 0
    %368 = vmatpush1.bf16.xpose.msra.mxu0 0
    %369 = vmatprep.subr.bf16.mxu0 0
    %370 = vmatpush1.bf16.xpose.msra.mxu0 %v353
    %371 = vmatprep.subr.bf16.mxu0 0
    %372 = vmatpush2.bf16.xpose.msra.mxu0 0
    %373 = vmatprep.subr.bf16.mxu0 0
    %374 = vmatpush2.bf16.xpose.msra.mxu0 0
    %375 = vmatprep.subr.bf16.mxu0 0
    %376 = vmatpush2.bf16.xpose.msra.mxu0 0
    %377 = vmatprep.subr.bf16.mxu0 0
    %378 = vmatpush2.bf16.xpose.msra.mxu0 0
    %379 = vmatprep.subr.bf16.mxu0 0
    %380 = vmatpush2.bf16.xpose.msra.mxu0 0
    %381 = vmatprep.subr.bf16.mxu0 0
    %382 = vmatpush2.bf16.xpose.msra.mxu0 0
    %383 = vmatprep.subr.bf16.mxu0 0
    %384 = vmatpush2.bf16.xpose.msra.mxu0 0
    %385 = vmatprep.subr.bf16.mxu0 0
    %386 = vmatpush2.bf16.xpose.msra.mxu0 0
    %387 = vmatprep.mubr.bf16.mxu0 0
    %388 = vmatmul.mubr.bf16.gmra.mxu0 %v350
    %v389 = vpop.f32.mrf.mxu0
    %v390 = vadd.f32 0.0, %v389
    %v391 = vpop.f32.mrf.mxu0
    %v392 = vpop.f32.mrf.mxu0
    %v393 = vpop.f32.mrf.mxu0
    %394 = vdwg.mxu0
    %395 = vrot.lane.b32.xlu0 %v292, 120
    %v396 = vpop.permute.xlu0 %395
    %v398 = vsel %vm300, %v292, 0
    %v401 = vsel %vm300, %v396, 0
    %403 = vmatprep.subr.bf16.mxu0 0
    %404 = vmatpush1.bf16.xpose.msra.mxu0 0
    %405 = vmatprep.subr.bf16.mxu0 0
    %406 = vmatpush1.bf16.xpose.msra.mxu0 0
    %407 = vmatprep.subr.bf16.mxu0 0
    %408 = vmatpush1.bf16.xpose.msra.mxu0 0
    %409 = vmatprep.subr.bf16.mxu0 0
    %410 = vmatpush1.bf16.xpose.msra.mxu0 0
    %411 = vmatprep.subr.bf16.mxu0 0
    %412 = vmatpush1.bf16.xpose.msra.mxu0 0
    %413 = vmatprep.subr.bf16.mxu0 0
    %414 = vmatpush1.bf16.xpose.msra.mxu0 0
    %415 = vmatprep.subr.bf16.mxu0 0
    %416 = vmatpush1.bf16.xpose.msra.mxu0 0
    %417 = vmatprep.subr.bf16.mxu0 0
    %418 = vmatpush1.bf16.xpose.msra.mxu0 %v401
    %419 = vmatprep.subr.bf16.mxu0 0
    %420 = vmatpush2.bf16.xpose.msra.mxu0 0
    %421 = vmatprep.subr.bf16.mxu0 0
    %422 = vmatpush2.bf16.xpose.msra.mxu0 0
    %423 = vmatprep.subr.bf16.mxu0 0
    %424 = vmatpush2.bf16.xpose.msra.mxu0 0
    %425 = vmatprep.subr.bf16.mxu0 0
    %426 = vmatpush2.bf16.xpose.msra.mxu0 0
    %427 = vmatprep.subr.bf16.mxu0 0
    %428 = vmatpush2.bf16.xpose.msra.mxu0 0
    %429 = vmatprep.subr.bf16.mxu0 0
    %430 = vmatpush2.bf16.xpose.msra.mxu0 0
    %431 = vmatprep.subr.bf16.mxu0 0
    %432 = vmatpush2.bf16.xpose.msra.mxu0 0
    %433 = vmatprep.subr.bf16.mxu0 0
    %434 = vmatpush2.bf16.xpose.msra.mxu0 0
    %435 = vmatprep.mubr.bf16.mxu0 0
    %436 = vmatmul.mubr.bf16.gmra.mxu0 %v398
    %v437 = vpop.f32.mrf.mxu0
    %v438 = vadd.f32 0.0, %v437
    %v439 = vpop.f32.mrf.mxu0
    %v440 = vpop.f32.mrf.mxu0
    %v441 = vpop.f32.mrf.mxu0
    %442 = vdwg.mxu0
    %443 = vrot.lane.b32.xlu0 %v293, 120
    %v444 = vpop.permute.xlu0 %443
    %v446 = vsel %vm300, %v293, 0
    %v449 = vsel %vm300, %v444, 0
    %451 = vmatprep.subr.bf16.mxu0 0
    %452 = vmatpush1.bf16.xpose.msra.mxu0 0
    %453 = vmatprep.subr.bf16.mxu0 0
    %454 = vmatpush1.bf16.xpose.msra.mxu0 0
    %455 = vmatprep.subr.bf16.mxu0 0
    %456 = vmatpush1.bf16.xpose.msra.mxu0 0
    %457 = vmatprep.subr.bf16.mxu0 0
    %458 = vmatpush1.bf16.xpose.msra.mxu0 0
    %459 = vmatprep.subr.bf16.mxu0 0
    %460 = vmatpush1.bf16.xpose.msra.mxu0 0
    %461 = vmatprep.subr.bf16.mxu0 0
    %462 = vmatpush1.bf16.xpose.msra.mxu0 0
    %463 = vmatprep.subr.bf16.mxu0 0
    %464 = vmatpush1.bf16.xpose.msra.mxu0 0
    %465 = vmatprep.subr.bf16.mxu0 0
    %466 = vmatpush1.bf16.xpose.msra.mxu0 %v449
    %467 = vmatprep.subr.bf16.mxu0 0
    %468 = vmatpush2.bf16.xpose.msra.mxu0 0
    %469 = vmatprep.subr.bf16.mxu0 0
    %470 = vmatpush2.bf16.xpose.msra.mxu0 0
    %471 = vmatprep.subr.bf16.mxu0 0
    %472 = vmatpush2.bf16.xpose.msra.mxu0 0
    %473 = vmatprep.subr.bf16.mxu0 0
    %474 = vmatpush2.bf16.xpose.msra.mxu0 0
    %475 = vmatprep.subr.bf16.mxu0 0
    %476 = vmatpush2.bf16.xpose.msra.mxu0 0
    %477 = vmatprep.subr.bf16.mxu0 0
    %478 = vmatpush2.bf16.xpose.msra.mxu0 0
    %479 = vmatprep.subr.bf16.mxu0 0
    %480 = vmatpush2.bf16.xpose.msra.mxu0 0
    %481 = vmatprep.subr.bf16.mxu0 0
    %482 = vmatpush2.bf16.xpose.msra.mxu0 0
    %483 = vmatprep.mubr.bf16.mxu0 0
    %484 = vmatmul.mubr.bf16.gmra.mxu0 %v446
    %v485 = vpop.f32.mrf.mxu0
    %v486 = vadd.f32 0.0, %v485
    %v487 = vpop.f32.mrf.mxu0
    %v488 = vpop.f32.mrf.mxu0
    %v489 = vpop.f32.mrf.mxu0
    %490 = vdwg.mxu0
    %491 = vrot.lane.b32.xlu0 %v294, 120
    %v492 = vpop.permute.xlu0 %491
    %v494 = vsel %vm300, %v294, 0
    %v497 = vsel %vm300, %v492, 0
    %499 = vmatprep.subr.bf16.mxu0 0
    %500 = vmatpush1.bf16.xpose.msra.mxu0 0
    %501 = vmatprep.subr.bf16.mxu0 0
    %502 = vmatpush1.bf16.xpose.msra.mxu0 0
    %503 = vmatprep.subr.bf16.mxu0 0
    %504 = vmatpush1.bf16.xpose.msra.mxu0 0
    %505 = vmatprep.subr.bf16.mxu0 0
    %506 = vmatpush1.bf16.xpose.msra.mxu0 0
    %507 = vmatprep.subr.bf16.mxu0 0
    %508 = vmatpush1.bf16.xpose.msra.mxu0 0
    %509 = vmatprep.subr.bf16.mxu0 0
    %510 = vmatpush1.bf16.xpose.msra.mxu0 0
    %511 = vmatprep.subr.bf16.mxu0 0
    %512 = vmatpush1.bf16.xpose.msra.mxu0 0
    %513 = vmatprep.subr.bf16.mxu0 0
    %514 = vmatpush1.bf16.xpose.msra.mxu0 %v497
    %515 = vmatprep.subr.bf16.mxu0 0
    %516 = vmatpush2.bf16.xpose.msra.mxu0 0
    %517 = vmatprep.subr.bf16.mxu0 0
    %518 = vmatpush2.bf16.xpose.msra.mxu0 0
    %519 = vmatprep.subr.bf16.mxu0 0
    %520 = vmatpush2.bf16.xpose.msra.mxu0 0
    %521 = vmatprep.subr.bf16.mxu0 0
    %522 = vmatpush2.bf16.xpose.msra.mxu0 0
    %523 = vmatprep.subr.bf16.mxu0 0
    %524 = vmatpush2.bf16.xpose.msra.mxu0 0
    %525 = vmatprep.subr.bf16.mxu0 0
    %526 = vmatpush2.bf16.xpose.msra.mxu0 0
    %527 = vmatprep.subr.bf16.mxu0 0
    %528 = vmatpush2.bf16.xpose.msra.mxu0 0
    %529 = vmatprep.subr.bf16.mxu0 0
    %530 = vmatpush2.bf16.xpose.msra.mxu0 0
    %531 = vmatprep.mubr.bf16.mxu0 0
    %532 = vmatmul.mubr.bf16.gmra.mxu0 %v494
    %v533 = vpop.f32.mrf.mxu0
    %v534 = vadd.f32 0.0, %v533
    %v535 = vpop.f32.mrf.mxu0
    %v536 = vpop.f32.mrf.mxu0
    %v537 = vpop.f32.mrf.mxu0
    %538 = vdwg.mxu0
    %539 = vrot.lane.b32.xlu0 %v295, 120
    %v540 = vpop.permute.xlu0 %539
    %v542 = vsel %vm300, %v295, 0
    %v545 = vsel %vm300, %v540, 0
    %547 = vmatprep.subr.bf16.mxu0 0
    %548 = vmatpush1.bf16.xpose.msra.mxu0 0
    %549 = vmatprep.subr.bf16.mxu0 0
    %550 = vmatpush1.bf16.xpose.msra.mxu0 0
    %551 = vmatprep.subr.bf16.mxu0 0
    %552 = vmatpush1.bf16.xpose.msra.mxu0 0
    %553 = vmatprep.subr.bf16.mxu0 0
    %554 = vmatpush1.bf16.xpose.msra.mxu0 0
    %555 = vmatprep.subr.bf16.mxu0 0
    %556 = vmatpush1.bf16.xpose.msra.mxu0 0
    %557 = vmatprep.subr.bf16.mxu0 0
    %558 = vmatpush1.bf16.xpose.msra.mxu0 0
    %559 = vmatprep.subr.bf16.mxu0 0
    %560 = vmatpush1.bf16.xpose.msra.mxu0 0
    %561 = vmatprep.subr.bf16.mxu0 0
    %562 = vmatpush1.bf16.xpose.msra.mxu0 %v545
    %563 = vmatprep.subr.bf16.mxu0 0
    %564 = vmatpush2.bf16.xpose.msra.mxu0 0
    %565 = vmatprep.subr.bf16.mxu0 0
    %566 = vmatpush2.bf16.xpose.msra.mxu0 0
    %567 = vmatprep.subr.bf16.mxu0 0
    %568 = vmatpush2.bf16.xpose.msra.mxu0 0
    %569 = vmatprep.subr.bf16.mxu0 0
    %570 = vmatpush2.bf16.xpose.msra.mxu0 0
    %571 = vmatprep.subr.bf16.mxu0 0
    %572 = vmatpush2.bf16.xpose.msra.mxu0 0
    %573 = vmatprep.subr.bf16.mxu0 0
    %574 = vmatpush2.bf16.xpose.msra.mxu0 0
    %575 = vmatprep.subr.bf16.mxu0 0
    %576 = vmatpush2.bf16.xpose.msra.mxu0 0
    %577 = vmatprep.subr.bf16.mxu0 0
    %578 = vmatpush2.bf16.xpose.msra.mxu0 0
    %579 = vmatprep.mubr.bf16.mxu0 0
    %580 = vmatmul.mubr.bf16.gmra.mxu0 %v542
    %v581 = vpop.f32.mrf.mxu0
    %v582 = vadd.f32 0.0, %v581
    %v583 = vpop.f32.mrf.mxu0
    %v584 = vpop.f32.mrf.mxu0
    %v585 = vpop.f32.mrf.mxu0
    %586 = vdwg.mxu0
    %587 = vrot.lane.b32.xlu0 %v296, 120
    %v588 = vpop.permute.xlu0 %587
    %v590 = vsel %vm300, %v296, 0
    %v593 = vsel %vm300, %v588, 0
    %595 = vmatprep.subr.bf16.mxu0 0
    %596 = vmatpush1.bf16.xpose.msra.mxu0 0
    %597 = vmatprep.subr.bf16.mxu0 0
    %598 = vmatpush1.bf16.xpose.msra.mxu0 0
    %599 = vmatprep.subr.bf16.mxu0 0
    %600 = vmatpush1.bf16.xpose.msra.mxu0 0
    %601 = vmatprep.subr.bf16.mxu0 0
    %602 = vmatpush1.bf16.xpose.msra.mxu0 0
    %603 = vmatprep.subr.bf16.mxu0 0
    %604 = vmatpush1.bf16.xpose.msra.mxu0 0
    %605 = vmatprep.subr.bf16.mxu0 0
    %606 = vmatpush1.bf16.xpose.msra.mxu0 0
    %607 = vmatprep.subr.bf16.mxu0 0
    %608 = vmatpush1.bf16.xpose.msra.mxu0 0
    %609 = vmatprep.subr.bf16.mxu0 0
    %610 = vmatpush1.bf16.xpose.msra.mxu0 %v593
    %611 = vmatprep.subr.bf16.mxu0 0
    %612 = vmatpush2.bf16.xpose.msra.mxu0 0
    %613 = vmatprep.subr.bf16.mxu0 0
    %614 = vmatpush2.bf16.xpose.msra.mxu0 0
    %615 = vmatprep.subr.bf16.mxu0 0
    %616 = vmatpush2.bf16.xpose.msra.mxu0 0
    %617 = vmatprep.subr.bf16.mxu0 0
    %618 = vmatpush2.bf16.xpose.msra.mxu0 0
    %619 = vmatprep.subr.bf16.mxu0 0
    %620 = vmatpush2.bf16.xpose.msra.mxu0 0
    %621 = vmatprep.subr.bf16.mxu0 0
    %622 = vmatpush2.bf16.xpose.msra.mxu0 0
    %623 = vmatprep.subr.bf16.mxu0 0
    %624 = vmatpush2.bf16.xpose.msra.mxu0 0
    %625 = vmatprep.subr.bf16.mxu0 0
    %626 = vmatpush2.bf16.xpose.msra.mxu0 0
    %627 = vmatprep.mubr.bf16.mxu0 0
    %628 = vmatmul.mubr.bf16.gmra.mxu0 %v590
    %v629 = vpop.f32.mrf.mxu0
    %v630 = vadd.f32 0.0, %v629
    %v631 = vpop.f32.mrf.mxu0
    %v632 = vpop.f32.mrf.mxu0
    %v633 = vpop.f32.mrf.mxu0
    %634 = vdwg.mxu0
    %635 = vrot.lane.b32.xlu0 %v297, 120
    %v636 = vpop.permute.xlu0 %635
    %v638 = vsel %vm300, %v297, 0
    %v641 = vsel %vm300, %v636, 0
    %643 = vmatprep.subr.bf16.mxu0 0
    %644 = vmatpush1.bf16.xpose.msra.mxu0 0
    %645 = vmatprep.subr.bf16.mxu0 0
    %646 = vmatpush1.bf16.xpose.msra.mxu0 0
    %647 = vmatprep.subr.bf16.mxu0 0
    %648 = vmatpush1.bf16.xpose.msra.mxu0 0
    %649 = vmatprep.subr.bf16.mxu0 0
    %650 = vmatpush1.bf16.xpose.msra.mxu0 0
    %651 = vmatprep.subr.bf16.mxu0 0
    %652 = vmatpush1.bf16.xpose.msra.mxu0 0
    %653 = vmatprep.subr.bf16.mxu0 0
    %654 = vmatpush1.bf16.xpose.msra.mxu0 0
    %655 = vmatprep.subr.bf16.mxu0 0
    %656 = vmatpush1.bf16.xpose.msra.mxu0 0
    %657 = vmatprep.subr.bf16.mxu0 0
    %658 = vmatpush1.bf16.xpose.msra.mxu0 %v641
    %659 = vmatprep.subr.bf16.mxu0 0
    %660 = vmatpush2.bf16.xpose.msra.mxu0 0
    %661 = vmatprep.subr.bf16.mxu0 0
    %662 = vmatpush2.bf16.xpose.msra.mxu0 0
    %663 = vmatprep.subr.bf16.mxu0 0
    %664 = vmatpush2.bf16.xpose.msra.mxu0 0
    %665 = vmatprep.subr.bf16.mxu0 0
    %666 = vmatpush2.bf16.xpose.msra.mxu0 0
    %667 = vmatprep.subr.bf16.mxu0 0
    %668 = vmatpush2.bf16.xpose.msra.mxu0 0
    %669 = vmatprep.subr.bf16.mxu0 0
    %670 = vmatpush2.bf16.xpose.msra.mxu0 0
    %671 = vmatprep.subr.bf16.mxu0 0
    %672 = vmatpush2.bf16.xpose.msra.mxu0 0
    %673 = vmatprep.subr.bf16.mxu0 0
    %674 = vmatpush2.bf16.xpose.msra.mxu0 0
    %675 = vmatprep.mubr.bf16.mxu0 0
    %676 = vmatmul.mubr.bf16.gmra.mxu0 %v638
    %v677 = vpop.f32.mrf.mxu0
    %v678 = vadd.f32 0.0, %v677
    %v679 = vpop.f32.mrf.mxu0
    %v680 = vpop.f32.mrf.mxu0
    %v681 = vpop.f32.mrf.mxu0
    %682 = vdwg.mxu0
    %v683 = vsel %vm300, %v342, -inf
    %684 = vmax.xlane.f32.xlu0 %v683
    %v685 = vpop.xlane.xlu0 %684
    %v686 = vsel %vm300, %v390, -inf
    %687 = vmax.xlane.f32.xlu0 %v686
    %v688 = vpop.xlane.xlu0 %687
    %v689 = vsel %vm300, %v438, -inf
    %690 = vmax.xlane.f32.xlu0 %v689
    %v691 = vpop.xlane.xlu0 %690
    %v692 = vsel %vm300, %v486, -inf
    %693 = vmax.xlane.f32.xlu0 %v692
    %v694 = vpop.xlane.xlu0 %693
    %v695 = vsel %vm300, %v534, -inf
    %696 = vmax.xlane.f32.xlu0 %v695
    %v697 = vpop.xlane.xlu0 %696
    %v698 = vsel %vm300, %v582, -inf
    %699 = vmax.xlane.f32.xlu0 %v698
    %v700 = vpop.xlane.xlu0 %699
    %v701 = vsel %vm300, %v630, -inf
    %702 = vmax.xlane.f32.xlu0 %v701
    %v703 = vpop.xlane.xlu0 %702
    %v704 = vsel %vm300, %v678, -inf
    %705 = vmax.xlane.f32.xlu0 %v704
    %v706 = vpop.xlane.xlu0 %705
    %v707 = vsub.f32 %v342, %v685
    %v708 = vsub.f32 %v390, %v688
    %v709 = vsub.f32 %v438, %v691
    %v710 = vsub.f32 %v486, %v694
    %v711 = vsub.f32 %v534, %v697
    %v712 = vsub.f32 %v582, %v700
    %v713 = vsub.f32 %v630, %v703
    %v714 = vsub.f32 %v678, %v706
    %v715 = vmul.f32 %v707, 1.442695
    %v716 = vpow.pop %v715
    %v717 = vmul.f32 %v708, 1.442695
    %v718 = vpow.pop %v717
    %v719 = vmul.f32 %v709, 1.442695
    %v720 = vpow.pop %v719
    %v721 = vmul.f32 %v710, 1.442695
    %v722 = vpow.pop %v721
    %v723 = vmul.f32 %v711, 1.442695
    %v724 = vpow.pop %v723
    %v725 = vmul.f32 %v712, 1.442695
    %v726 = vpow.pop %v725
    %v727 = vmul.f32 %v713, 1.442695
    %v728 = vpow.pop %v727
    %v729 = vmul.f32 %v714, 1.442695
    %v730 = vpow.pop %v729
    %v731 = vsel %vm300, %v716, 0.0
    %732 = vadd.xlane.f32.xlu0 %v731
    %v733 = vpop.xlane.xlu0 %732
    %v734 = vsel %vm300, %v718, 0.0
    %735 = vadd.xlane.f32.xlu0 %v734
    %v736 = vpop.xlane.xlu0 %735
    %v737 = vsel %vm300, %v720, 0.0
    %738 = vadd.xlane.f32.xlu0 %v737
    %v739 = vpop.xlane.xlu0 %738
    %v740 = vsel %vm300, %v722, 0.0
    %741 = vadd.xlane.f32.xlu0 %v740
    %v742 = vpop.xlane.xlu0 %741
    %v743 = vsel %vm300, %v724, 0.0
    %744 = vadd.xlane.f32.xlu0 %v743
    %v745 = vpop.xlane.xlu0 %744
    %v746 = vsel %vm300, %v726, 0.0
    %747 = vadd.xlane.f32.xlu0 %v746
    %v748 = vpop.xlane.xlu0 %747
    %v749 = vsel %vm300, %v728, 0.0
    %750 = vadd.xlane.f32.xlu0 %v749
    %v751 = vpop.xlane.xlu0 %750
    %v752 = vsel %vm300, %v730, 0.0
    %753 = vadd.xlane.f32.xlu0 %v752
    %v754 = vpop.xlane.xlu0 %753
    %v755 = vrcp.pop %v733
    %v756 = vrcp.pop %v736
    %v757 = vrcp.pop %v739
    %v758 = vrcp.pop %v742
    %v759 = vrcp.pop %v745
    %v760 = vrcp.pop %v748
    %v761 = vrcp.pop %v751
    %v762 = vrcp.pop %v754
    %v763 = vmul.f32 %v716, %v755
    %v764 = vmul.f32 %v718, %v756
    %v765 = vmul.f32 %v720, %v757
    %v766 = vmul.f32 %v722, %v758
    %v767 = vmul.f32 %v724, %v759
    %v768 = vmul.f32 %v726, %v760
    %v769 = vmul.f32 %v728, %v761
    %v770 = vmul.f32 %v730, %v762
    %v771 = vpack.c.bf16 %v763, %v763
    %v772 = vpack.c.bf16 %v764, %v764
    %v773 = vpack.c.bf16 %v765, %v765
    %v774 = vpack.c.bf16 %v766, %v766
    %v775 = vpack.c.bf16 %v767, %v767
    %v776 = vpack.c.bf16 %v768, %v768
    %v777 = vpack.c.bf16 %v769, %v769
    %v778 = vpack.c.bf16 %v770, %v770
    %779 = vrot.lane.b32.xlu0 %v290, 112
    %v780 = vpop.permute.xlu0 %779
    %v782 = vsel %vm300, %v771, 0
    %vm784 = vcmask 1043456
    %v786 = vsel %vm784, %v780, 0
    %788 = vmatprep.subr.bf16.mxu0 0
    %789 = vmatpush1.bf16.msra.mxu0 0
    %790 = vmatprep.subr.bf16.mxu0 0
    %791 = vmatpush1.bf16.msra.mxu0 0
    %792 = vmatprep.subr.bf16.mxu0 0
    %793 = vmatpush1.bf16.msra.mxu0 0
    %794 = vmatprep.subr.bf16.mxu0 0
    %795 = vmatpush1.bf16.msra.mxu0 0
    %796 = vmatprep.subr.bf16.mxu0 0
    %797 = vmatpush1.bf16.msra.mxu0 0
    %798 = vmatprep.subr.bf16.mxu0 0
    %799 = vmatpush1.bf16.msra.mxu0 0
    %800 = vmatprep.subr.bf16.mxu0 0
    %801 = vmatpush1.bf16.msra.mxu0 0
    %802 = vmatprep.subr.bf16.mxu0 0
    %803 = vmatpush1.bf16.msra.mxu0 %v786
    %804 = vmatprep.subr.bf16.mxu0 0
    %805 = vmatpush2.bf16.msra.mxu0 0
    %806 = vmatprep.subr.bf16.mxu0 0
    %807 = vmatpush2.bf16.msra.mxu0 0
    %808 = vmatprep.subr.bf16.mxu0 0
    %809 = vmatpush2.bf16.msra.mxu0 0
    %810 = vmatprep.subr.bf16.mxu0 0
    %811 = vmatpush2.bf16.msra.mxu0 0
    %812 = vmatprep.subr.bf16.mxu0 0
    %813 = vmatpush2.bf16.msra.mxu0 0
    %814 = vmatprep.subr.bf16.mxu0 0
    %815 = vmatpush2.bf16.msra.mxu0 0
    %816 = vmatprep.subr.bf16.mxu0 0
    %817 = vmatpush2.bf16.msra.mxu0 0
    %818 = vmatprep.subr.bf16.mxu0 0
    %819 = vmatpush2.bf16.msra.mxu0 0
    %820 = vmatprep.mubr.bf16.mxu0 0
    %821 = vmatmul.mubr.bf16.gmra.mxu0 %v782
    %v822 = vpop.f32.mrf.mxu0
    %v823 = vadd.f32 0.0, %v822
    %v824 = vpop.f32.mrf.mxu0
    %v825 = vpop.f32.mrf.mxu0
    %v826 = vpop.f32.mrf.mxu0
    %827 = vdwg.mxu0
    %828 = vrot.lane.b32.xlu0 %v291, 112
    %v829 = vpop.permute.xlu0 %828
    %v831 = vsel %vm300, %v772, 0
    %v834 = vsel %vm784, %v829, 0
    %836 = vmatprep.subr.bf16.mxu0 0
    %837 = vmatpush1.bf16.msra.mxu0 0
    %838 = vmatprep.subr.bf16.mxu0 0
    %839 = vmatpush1.bf16.msra.mxu0 0
    %840 = vmatprep.subr.bf16.mxu0 0
    %841 = vmatpush1.bf16.msra.mxu0 0
    %842 = vmatprep.subr.bf16.mxu0 0
    %843 = vmatpush1.bf16.msra.mxu0 0
    %844 = vmatprep.subr.bf16.mxu0 0
    %845 = vmatpush1.bf16.msra.mxu0 0
    %846 = vmatprep.subr.bf16.mxu0 0
    %847 = vmatpush1.bf16.msra.mxu0 0
    %848 = vmatprep.subr.bf16.mxu0 0
    %849 = vmatpush1.bf16.msra.mxu0 0
    %850 = vmatprep.subr.bf16.mxu0 0
    %851 = vmatpush1.bf16.msra.mxu0 %v834
    %852 = vmatprep.subr.bf16.mxu0 0
    %853 = vmatpush2.bf16.msra.mxu0 0
    %854 = vmatprep.subr.bf16.mxu0 0
    %855 = vmatpush2.bf16.msra.mxu0 0
    %856 = vmatprep.subr.bf16.mxu0 0
    %857 = vmatpush2.bf16.msra.mxu0 0
    %858 = vmatprep.subr.bf16.mxu0 0
    %859 = vmatpush2.bf16.msra.mxu0 0
    %860 = vmatprep.subr.bf16.mxu0 0
    %861 = vmatpush2.bf16.msra.mxu0 0
    %862 = vmatprep.subr.bf16.mxu0 0
    %863 = vmatpush2.bf16.msra.mxu0 0
    %864 = vmatprep.subr.bf16.mxu0 0
    %865 = vmatpush2.bf16.msra.mxu0 0
    %866 = vmatprep.subr.bf16.mxu0 0
    %867 = vmatpush2.bf16.msra.mxu0 0
    %868 = vmatprep.mubr.bf16.mxu0 0
    %869 = vmatmul.mubr.bf16.gmra.mxu0 %v831
    %v870 = vpop.f32.mrf.mxu0
    %v871 = vadd.f32 0.0, %v870
    %v872 = vpop.f32.mrf.mxu0
    %v873 = vpop.f32.mrf.mxu0
    %v874 = vpop.f32.mrf.mxu0
    %875 = vdwg.mxu0
    %876 = vrot.lane.b32.xlu0 %v292, 112
    %v877 = vpop.permute.xlu0 %876
    %v879 = vsel %vm300, %v773, 0
    %v882 = vsel %vm784, %v877, 0
    %884 = vmatprep.subr.bf16.mxu0 0
    %885 = vmatpush1.bf16.msra.mxu0 0
    %886 = vmatprep.subr.bf16.mxu0 0
    %887 = vmatpush1.bf16.msra.mxu0 0
    %888 = vmatprep.subr.bf16.mxu0 0
    %889 = vmatpush1.bf16.msra.mxu0 0
    %890 = vmatprep.subr.bf16.mxu0 0
    %891 = vmatpush1.bf16.msra.mxu0 0
    %892 = vmatprep.subr.bf16.mxu0 0
    %893 = vmatpush1.bf16.msra.mxu0 0
    %894 = vmatprep.subr.bf16.mxu0 0
    %895 = vmatpush1.bf16.msra.mxu0 0
    %896 = vmatprep.subr.bf16.mxu0 0
    %897 = vmatpush1.bf16.msra.mxu0 0
    %898 = vmatprep.subr.bf16.mxu0 0
    %899 = vmatpush1.bf16.msra.mxu0 %v882
    %900 = vmatprep.subr.bf16.mxu0 0
    %901 = vmatpush2.bf16.msra.mxu0 0
    %902 = vmatprep.subr.bf16.mxu0 0
    %903 = vmatpush2.bf16.msra.mxu0 0
    %904 = vmatprep.subr.bf16.mxu0 0
    %905 = vmatpush2.bf16.msra.mxu0 0
    %906 = vmatprep.subr.bf16.mxu0 0
    %907 = vmatpush2.bf16.msra.mxu0 0
    %908 = vmatprep.subr.bf16.mxu0 0
    %909 = vmatpush2.bf16.msra.mxu0 0
    %910 = vmatprep.subr.bf16.mxu0 0
    %911 = vmatpush2.bf16.msra.mxu0 0
    %912 = vmatprep.subr.bf16.mxu0 0
    %913 = vmatpush2.bf16.msra.mxu0 0
    %914 = vmatprep.subr.bf16.mxu0 0
    %915 = vmatpush2.bf16.msra.mxu0 0
    %916 = vmatprep.mubr.bf16.mxu0 0
    %917 = vmatmul.mubr.bf16.gmra.mxu0 %v879
    %v918 = vpop.f32.mrf.mxu0
    %v919 = vadd.f32 0.0, %v918
    %v920 = vpop.f32.mrf.mxu0
    %v921 = vpop.f32.mrf.mxu0
    %v922 = vpop.f32.mrf.mxu0
    %923 = vdwg.mxu0
    %924 = vrot.lane.b32.xlu0 %v293, 112
    %v925 = vpop.permute.xlu0 %924
    %v927 = vsel %vm300, %v774, 0
    %v930 = vsel %vm784, %v925, 0
    %932 = vmatprep.subr.bf16.mxu0 0
    %933 = vmatpush1.bf16.msra.mxu0 0
    %934 = vmatprep.subr.bf16.mxu0 0
    %935 = vmatpush1.bf16.msra.mxu0 0
    %936 = vmatprep.subr.bf16.mxu0 0
    %937 = vmatpush1.bf16.msra.mxu0 0
    %938 = vmatprep.subr.bf16.mxu0 0
    %939 = vmatpush1.bf16.msra.mxu0 0
    %940 = vmatprep.subr.bf16.mxu0 0
    %941 = vmatpush1.bf16.msra.mxu0 0
    %942 = vmatprep.subr.bf16.mxu0 0
    %943 = vmatpush1.bf16.msra.mxu0 0
    %944 = vmatprep.subr.bf16.mxu0 0
    %945 = vmatpush1.bf16.msra.mxu0 0
    %946 = vmatprep.subr.bf16.mxu0 0
    %947 = vmatpush1.bf16.msra.mxu0 %v930
    %948 = vmatprep.subr.bf16.mxu0 0
    %949 = vmatpush2.bf16.msra.mxu0 0
    %950 = vmatprep.subr.bf16.mxu0 0
    %951 = vmatpush2.bf16.msra.mxu0 0
    %952 = vmatprep.subr.bf16.mxu0 0
    %953 = vmatpush2.bf16.msra.mxu0 0
    %954 = vmatprep.subr.bf16.mxu0 0
    %955 = vmatpush2.bf16.msra.mxu0 0
    %956 = vmatprep.subr.bf16.mxu0 0
    %957 = vmatpush2.bf16.msra.mxu0 0
    %958 = vmatprep.subr.bf16.mxu0 0
    %959 = vmatpush2.bf16.msra.mxu0 0
    %960 = vmatprep.subr.bf16.mxu0 0
    %961 = vmatpush2.bf16.msra.mxu0 0
    %962 = vmatprep.subr.bf16.mxu0 0
    %963 = vmatpush2.bf16.msra.mxu0 0
    %964 = vmatprep.mubr.bf16.mxu0 0
    %965 = vmatmul.mubr.bf16.gmra.mxu0 %v927
    %v966 = vpop.f32.mrf.mxu0
    %v967 = vadd.f32 0.0, %v966
    %v968 = vpop.f32.mrf.mxu0
    %v969 = vpop.f32.mrf.mxu0
    %v970 = vpop.f32.mrf.mxu0
    %971 = vdwg.mxu0
    %972 = vrot.lane.b32.xlu0 %v294, 112
    %v973 = vpop.permute.xlu0 %972
    %v975 = vsel %vm300, %v775, 0
    %v978 = vsel %vm784, %v973, 0
    %980 = vmatprep.subr.bf16.mxu0 0
    %981 = vmatpush1.bf16.msra.mxu0 0
    %982 = vmatprep.subr.bf16.mxu0 0
    %983 = vmatpush1.bf16.msra.mxu0 0
    %984 = vmatprep.subr.bf16.mxu0 0
    %985 = vmatpush1.bf16.msra.mxu0 0
    %986 = vmatprep.subr.bf16.mxu0 0
    %987 = vmatpush1.bf16.msra.mxu0 0
    %988 = vmatprep.subr.bf16.mxu0 0
    %989 = vmatpush1.bf16.msra.mxu0 0
    %990 = vmatprep.subr.bf16.mxu0 0
    %991 = vmatpush1.bf16.msra.mxu0 0
    %992 = vmatprep.subr.bf16.mxu0 0
    %993 = vmatpush1.bf16.msra.mxu0 0
    %994 = vmatprep.subr.bf16.mxu0 0
    %995 = vmatpush1.bf16.msra.mxu0 %v978
    %996 = vmatprep.subr.bf16.mxu0 0
    %997 = vmatpush2.bf16.msra.mxu0 0
    %998 = vmatprep.subr.bf16.mxu0 0
    %999 = vmatpush2.bf16.msra.mxu0 0
    %1000 = vmatprep.subr.bf16.mxu0 0
    %1001 = vmatpush2.bf16.msra.mxu0 0
    %1002 = vmatprep.subr.bf16.mxu0 0
    %1003 = vmatpush2.bf16.msra.mxu0 0
    %1004 = vmatprep.subr.bf16.mxu0 0
    %1005 = vmatpush2.bf16.msra.mxu0 0
    %1006 = vmatprep.subr.bf16.mxu0 0
    %1007 = vmatpush2.bf16.msra.mxu0 0
    %1008 = vmatprep.subr.bf16.mxu0 0
    %1009 = vmatpush2.bf16.msra.mxu0 0
    %1010 = vmatprep.subr.bf16.mxu0 0
    %1011 = vmatpush2.bf16.msra.mxu0 0
    %1012 = vmatprep.mubr.bf16.mxu0 0
    %1013 = vmatmul.mubr.bf16.gmra.mxu0 %v975
    %v1014 = vpop.f32.mrf.mxu0
    %v1015 = vadd.f32 0.0, %v1014
    %v1016 = vpop.f32.mrf.mxu0
    %v1017 = vpop.f32.mrf.mxu0
    %v1018 = vpop.f32.mrf.mxu0
    %1019 = vdwg.mxu0
    %1020 = vrot.lane.b32.xlu0 %v295, 112
    %v1021 = vpop.permute.xlu0 %1020
    %v1023 = vsel %vm300, %v776, 0
    %v1026 = vsel %vm784, %v1021, 0
    %1028 = vmatprep.subr.bf16.mxu0 0
    %1029 = vmatpush1.bf16.msra.mxu0 0
    %1030 = vmatprep.subr.bf16.mxu0 0
    %1031 = vmatpush1.bf16.msra.mxu0 0
    %1032 = vmatprep.subr.bf16.mxu0 0
    %1033 = vmatpush1.bf16.msra.mxu0 0
    %1034 = vmatprep.subr.bf16.mxu0 0
    %1035 = vmatpush1.bf16.msra.mxu0 0
    %1036 = vmatprep.subr.bf16.mxu0 0
    %1037 = vmatpush1.bf16.msra.mxu0 0
    %1038 = vmatprep.subr.bf16.mxu0 0
    %1039 = vmatpush1.bf16.msra.mxu0 0
    %1040 = vmatprep.subr.bf16.mxu0 0
    %1041 = vmatpush1.bf16.msra.mxu0 0
    %1042 = vmatprep.subr.bf16.mxu0 0
    %1043 = vmatpush1.bf16.msra.mxu0 %v1026
    %1044 = vmatprep.subr.bf16.mxu0 0
    %1045 = vmatpush2.bf16.msra.mxu0 0
    %1046 = vmatprep.subr.bf16.mxu0 0
    %1047 = vmatpush2.bf16.msra.mxu0 0
    %1048 = vmatprep.subr.bf16.mxu0 0
    %1049 = vmatpush2.bf16.msra.mxu0 0
    %1050 = vmatprep.subr.bf16.mxu0 0
    %1051 = vmatpush2.bf16.msra.mxu0 0
    %1052 = vmatprep.subr.bf16.mxu0 0
    %1053 = vmatpush2.bf16.msra.mxu0 0
    %1054 = vmatprep.subr.bf16.mxu0 0
    %1055 = vmatpush2.bf16.msra.mxu0 0
    %1056 = vmatprep.subr.bf16.mxu0 0
    %1057 = vmatpush2.bf16.msra.mxu0 0
    %1058 = vmatprep.subr.bf16.mxu0 0
    %1059 = vmatpush2.bf16.msra.mxu0 0
    %1060 = vmatprep.mubr.bf16.mxu0 0
    %1061 = vmatmul.mubr.bf16.gmra.mxu0 %v1023
    %v1062 = vpop.f32.mrf.mxu0
    %v1063 = vadd.f32 0.0, %v1062
    %v1064 = vpop.f32.mrf.mxu0
    %v1065 = vpop.f32.mrf.mxu0
    %v1066 = vpop.f32.mrf.mxu0
    %1067 = vdwg.mxu0
    %1068 = vrot.lane.b32.xlu0 %v296, 112
    %v1069 = vpop.permute.xlu0 %1068
    %v1071 = vsel %vm300, %v777, 0
    %v1074 = vsel %vm784, %v1069, 0
    %1076 = vmatprep.subr.bf16.mxu0 0
    %1077 = vmatpush1.bf16.msra.mxu0 0
    %1078 = vmatprep.subr.bf16.mxu0 0
    %1079 = vmatpush1.bf16.msra.mxu0 0
    %1080 = vmatprep.subr.bf16.mxu0 0
    %1081 = vmatpush1.bf16.msra.mxu0 0
    %1082 = vmatprep.subr.bf16.mxu0 0
    %1083 = vmatpush1.bf16.msra.mxu0 0
    %1084 = vmatprep.subr.bf16.mxu0 0
    %1085 = vmatpush1.bf16.msra.mxu0 0
    %1086 = vmatprep.subr.bf16.mxu0 0
    %1087 = vmatpush1.bf16.msra.mxu0 0
    %1088 = vmatprep.subr.bf16.mxu0 0
    %1089 = vmatpush1.bf16.msra.mxu0 0
    %1090 = vmatprep.subr.bf16.mxu0 0
    %1091 = vmatpush1.bf16.msra.mxu0 %v1074
    %1092 = vmatprep.subr.bf16.mxu0 0
    %1093 = vmatpush2.bf16.msra.mxu0 0
    %1094 = vmatprep.subr.bf16.mxu0 0
    %1095 = vmatpush2.bf16.msra.mxu0 0
    %1096 = vmatprep.subr.bf16.mxu0 0
    %1097 = vmatpush2.bf16.msra.mxu0 0
    %1098 = vmatprep.subr.bf16.mxu0 0
    %1099 = vmatpush2.bf16.msra.mxu0 0
    %1100 = vmatprep.subr.bf16.mxu0 0
    %1101 = vmatpush2.bf16.msra.mxu0 0
    %1102 = vmatprep.subr.bf16.mxu0 0
    %1103 = vmatpush2.bf16.msra.mxu0 0
    %1104 = vmatprep.subr.bf16.mxu0 0
    %1105 = vmatpush2.bf16.msra.mxu0 0
    %1106 = vmatprep.subr.bf16.mxu0 0
    %1107 = vmatpush2.bf16.msra.mxu0 0
    %1108 = vmatprep.mubr.bf16.mxu0 0
    %1109 = vmatmul.mubr.bf16.gmra.mxu0 %v1071
    %v1110 = vpop.f32.mrf.mxu0
    %v1111 = vadd.f32 0.0, %v1110
    %v1112 = vpop.f32.mrf.mxu0
    %v1113 = vpop.f32.mrf.mxu0
    %v1114 = vpop.f32.mrf.mxu0
    %1115 = vdwg.mxu0
    %1116 = vrot.lane.b32.xlu0 %v297, 112
    %v1117 = vpop.permute.xlu0 %1116
    %v1119 = vsel %vm300, %v778, 0
    %v1122 = vsel %vm784, %v1117, 0
    %1124 = vmatprep.subr.bf16.mxu0 0
    %1125 = vmatpush1.bf16.msra.mxu0 0
    %1126 = vmatprep.subr.bf16.mxu0 0
    %1127 = vmatpush1.bf16.msra.mxu0 0
    %1128 = vmatprep.subr.bf16.mxu0 0
    %1129 = vmatpush1.bf16.msra.mxu0 0
    %1130 = vmatprep.subr.bf16.mxu0 0
    %1131 = vmatpush1.bf16.msra.mxu0 0
    %1132 = vmatprep.subr.bf16.mxu0 0
    %1133 = vmatpush1.bf16.msra.mxu0 0
    %1134 = vmatprep.subr.bf16.mxu0 0
    %1135 = vmatpush1.bf16.msra.mxu0 0
    %1136 = vmatprep.subr.bf16.mxu0 0
    %1137 = vmatpush1.bf16.msra.mxu0 0
    %1138 = vmatprep.subr.bf16.mxu0 0
    %1139 = vmatpush1.bf16.msra.mxu0 %v1122
    %1140 = vmatprep.subr.bf16.mxu0 0
    %1141 = vmatpush2.bf16.msra.mxu0 0
    %1142 = vmatprep.subr.bf16.mxu0 0
    %1143 = vmatpush2.bf16.msra.mxu0 0
    %1144 = vmatprep.subr.bf16.mxu0 0
    %1145 = vmatpush2.bf16.msra.mxu0 0
    %1146 = vmatprep.subr.bf16.mxu0 0
    %1147 = vmatpush2.bf16.msra.mxu0 0
    %1148 = vmatprep.subr.bf16.mxu0 0
    %1149 = vmatpush2.bf16.msra.mxu0 0
    %1150 = vmatprep.subr.bf16.mxu0 0
    %1151 = vmatpush2.bf16.msra.mxu0 0
    %1152 = vmatprep.subr.bf16.mxu0 0
    %1153 = vmatpush2.bf16.msra.mxu0 0
    %1154 = vmatprep.subr.bf16.mxu0 0
    %1155 = vmatpush2.bf16.msra.mxu0 0
    %1156 = vmatprep.mubr.bf16.mxu0 0
    %1157 = vmatmul.mubr.bf16.gmra.mxu0 %v1119
    %v1158 = vpop.f32.mrf.mxu0
    %v1159 = vadd.f32 0.0, %v1158
    %v1160 = vpop.f32.mrf.mxu0
    %v1161 = vpop.f32.mrf.mxu0
    %v1162 = vpop.f32.mrf.mxu0
    %1163 = vdwg.mxu0
    %v1164 = vpack.c.bf16 %v871, %v823
    %v1165 = vpack.c.bf16 %v967, %v919
    %v1166 = vpack.c.bf16 %v1063, %v1015
    %v1167 = vpack.c.bf16 %v1159, %v1111
    %v1169 = vsel %vm300, %v1164, 0
    %v1172 = vsel %vm784, %v34, 0
    %1174 = vmatprep.subr.bf16.mxu0 0
    %1175 = vmatpush1.bf16.msra.mxu0 0
    %1176 = vmatprep.subr.bf16.mxu0 0
    %1177 = vmatpush1.bf16.msra.mxu0 0
    %1178 = vmatprep.subr.bf16.mxu0 0
    %1179 = vmatpush1.bf16.msra.mxu0 0
    %1180 = vmatprep.subr.bf16.mxu0 0
    %1181 = vmatpush1.bf16.msra.mxu0 0
    %1182 = vmatprep.subr.bf16.mxu0 0
    %1183 = vmatpush1.bf16.msra.mxu0 0
    %1184 = vmatprep.subr.bf16.mxu0 0
    %1185 = vmatpush1.bf16.msra.mxu0 0
    %1186 = vmatprep.subr.bf16.mxu0 0
    %1187 = vmatpush1.bf16.msra.mxu0 0
    %1188 = vmatprep.subr.bf16.mxu0 0
    %1189 = vmatpush1.bf16.msra.mxu0 %v1172
    %1190 = vmatprep.subr.bf16.mxu0 0
    %1191 = vmatpush2.bf16.msra.mxu0 0
    %1192 = vmatprep.subr.bf16.mxu0 0
    %1193 = vmatpush2.bf16.msra.mxu0 0
    %1194 = vmatprep.subr.bf16.mxu0 0
    %1195 = vmatpush2.bf16.msra.mxu0 0
    %1196 = vmatprep.subr.bf16.mxu0 0
    %1197 = vmatpush2.bf16.msra.mxu0 0
    %1198 = vmatprep.subr.bf16.mxu0 0
    %1199 = vmatpush2.bf16.msra.mxu0 0
    %1200 = vmatprep.subr.bf16.mxu0 0
    %1201 = vmatpush2.bf16.msra.mxu0 0
    %1202 = vmatprep.subr.bf16.mxu0 0
    %1203 = vmatpush2.bf16.msra.mxu0 0
    %1204 = vmatprep.subr.bf16.mxu0 0
    %1205 = vmatpush2.bf16.msra.mxu0 0
    %1206 = vmatprep.mubr.bf16.mxu0 0
    %1207 = vmatmul.mubr.bf16.gmra.mxu0 %v1169
    %v1208 = vpop.f32.mrf.mxu0
    %v1209 = vadd.f32 0.0, %v1208
    %v1210 = vpop.f32.mrf.mxu0
    %v1211 = vpop.f32.mrf.mxu0
    %v1212 = vadd.f32 0.0, %v1211
    %v1213 = vpop.f32.mrf.mxu0
    %1214 = vdwg.mxu0
    %v1216 = vsel %vm300, %v1165, 0
    %v1219 = vsel %vm784, %v35, 0
    %1221 = vmatprep.subr.bf16.mxu0 0
    %1222 = vmatpush1.bf16.msra.mxu0 0
    %1223 = vmatprep.subr.bf16.mxu0 0
    %1224 = vmatpush1.bf16.msra.mxu0 0
    %1225 = vmatprep.subr.bf16.mxu0 0
    %1226 = vmatpush1.bf16.msra.mxu0 0
    %1227 = vmatprep.subr.bf16.mxu0 0
    %1228 = vmatpush1.bf16.msra.mxu0 0
    %1229 = vmatprep.subr.bf16.mxu0 0
    %1230 = vmatpush1.bf16.msra.mxu0 0
    %1231 = vmatprep.subr.bf16.mxu0 0
    %1232 = vmatpush1.bf16.msra.mxu0 0
    %1233 = vmatprep.subr.bf16.mxu0 0
    %1234 = vmatpush1.bf16.msra.mxu0 0
    %1235 = vmatprep.subr.bf16.mxu0 0
    %1236 = vmatpush1.bf16.msra.mxu0 %v1219
    %1237 = vmatprep.subr.bf16.mxu0 0
    %1238 = vmatpush2.bf16.msra.mxu0 0
    %1239 = vmatprep.subr.bf16.mxu0 0
    %1240 = vmatpush2.bf16.msra.mxu0 0
    %1241 = vmatprep.subr.bf16.mxu0 0
    %1242 = vmatpush2.bf16.msra.mxu0 0
    %1243 = vmatprep.subr.bf16.mxu0 0
    %1244 = vmatpush2.bf16.msra.mxu0 0
    %1245 = vmatprep.subr.bf16.mxu0 0
    %1246 = vmatpush2.bf16.msra.mxu0 0
    %1247 = vmatprep.subr.bf16.mxu0 0
    %1248 = vmatpush2.bf16.msra.mxu0 0
    %1249 = vmatprep.subr.bf16.mxu0 0
    %1250 = vmatpush2.bf16.msra.mxu0 0
    %1251 = vmatprep.subr.bf16.mxu0 0
    %1252 = vmatpush2.bf16.msra.mxu0 0
    %1253 = vmatprep.mubr.bf16.mxu0 0
    %1254 = vmatmul.mubr.bf16.gmra.mxu0 %v1216
    %v1255 = vpop.f32.mrf.mxu0
    %v1256 = vadd.f32 0.0, %v1255
    %v1257 = vpop.f32.mrf.mxu0
    %v1258 = vpop.f32.mrf.mxu0
    %v1259 = vadd.f32 0.0, %v1258
    %v1260 = vpop.f32.mrf.mxu0
    %1261 = vdwg.mxu0
    %v1263 = vsel %vm300, %v1166, 0
    %v1266 = vsel %vm784, %v36, 0
    %1268 = vmatprep.subr.bf16.mxu0 0
    %1269 = vmatpush1.bf16.msra.mxu0 0
    %1270 = vmatprep.subr.bf16.mxu0 0
    %1271 = vmatpush1.bf16.msra.mxu0 0
    %1272 = vmatprep.subr.bf16.mxu0 0
    %1273 = vmatpush1.bf16.msra.mxu0 0
    %1274 = vmatprep.subr.bf16.mxu0 0
    %1275 = vmatpush1.bf16.msra.mxu0 0
    %1276 = vmatprep.subr.bf16.mxu0 0
    %1277 = vmatpush1.bf16.msra.mxu0 0
    %1278 = vmatprep.subr.bf16.mxu0 0
    %1279 = vmatpush1.bf16.msra.mxu0 0
    %1280 = vmatprep.subr.bf16.mxu0 0
    %1281 = vmatpush1.bf16.msra.mxu0 0
    %1282 = vmatprep.subr.bf16.mxu0 0
    %1283 = vmatpush1.bf16.msra.mxu0 %v1266
    %1284 = vmatprep.subr.bf16.mxu0 0
    %1285 = vmatpush2.bf16.msra.mxu0 0
    %1286 = vmatprep.subr.bf16.mxu0 0
    %1287 = vmatpush2.bf16.msra.mxu0 0
    %1288 = vmatprep.subr.bf16.mxu0 0
    %1289 = vmatpush2.bf16.msra.mxu0 0
    %1290 = vmatprep.subr.bf16.mxu0 0
    %1291 = vmatpush2.bf16.msra.mxu0 0
    %1292 = vmatprep.subr.bf16.mxu0 0
    %1293 = vmatpush2.bf16.msra.mxu0 0
    %1294 = vmatprep.subr.bf16.mxu0 0
    %1295 = vmatpush2.bf16.msra.mxu0 0
    %1296 = vmatprep.subr.bf16.mxu0 0
    %1297 = vmatpush2.bf16.msra.mxu0 0
    %1298 = vmatprep.subr.bf16.mxu0 0
    %1299 = vmatpush2.bf16.msra.mxu0 0
    %1300 = vmatprep.mubr.bf16.mxu0 0
    %1301 = vmatmul.mubr.bf16.gmra.mxu0 %v1263
    %v1302 = vpop.f32.mrf.mxu0
    %v1303 = vadd.f32 0.0, %v1302
    %v1304 = vpop.f32.mrf.mxu0
    %v1305 = vpop.f32.mrf.mxu0
    %v1306 = vadd.f32 0.0, %v1305
    %v1307 = vpop.f32.mrf.mxu0
    %1308 = vdwg.mxu0
    %v1310 = vsel %vm300, %v1167, 0
    %v1313 = vsel %vm784, %v37, 0
    %1315 = vmatprep.subr.bf16.mxu0 0
    %1316 = vmatpush1.bf16.msra.mxu0 0
    %1317 = vmatprep.subr.bf16.mxu0 0
    %1318 = vmatpush1.bf16.msra.mxu0 0
    %1319 = vmatprep.subr.bf16.mxu0 0
    %1320 = vmatpush1.bf16.msra.mxu0 0
    %1321 = vmatprep.subr.bf16.mxu0 0
    %1322 = vmatpush1.bf16.msra.mxu0 0
    %1323 = vmatprep.subr.bf16.mxu0 0
    %1324 = vmatpush1.bf16.msra.mxu0 0
    %1325 = vmatprep.subr.bf16.mxu0 0
    %1326 = vmatpush1.bf16.msra.mxu0 0
    %1327 = vmatprep.subr.bf16.mxu0 0
    %1328 = vmatpush1.bf16.msra.mxu0 0
    %1329 = vmatprep.subr.bf16.mxu0 0
    %1330 = vmatpush1.bf16.msra.mxu0 %v1313
    %1331 = vmatprep.subr.bf16.mxu0 0
    %1332 = vmatpush2.bf16.msra.mxu0 0
    %1333 = vmatprep.subr.bf16.mxu0 0
    %1334 = vmatpush2.bf16.msra.mxu0 0
    %1335 = vmatprep.subr.bf16.mxu0 0
    %1336 = vmatpush2.bf16.msra.mxu0 0
    %1337 = vmatprep.subr.bf16.mxu0 0
    %1338 = vmatpush2.bf16.msra.mxu0 0
    %1339 = vmatprep.subr.bf16.mxu0 0
    %1340 = vmatpush2.bf16.msra.mxu0 0
    %1341 = vmatprep.subr.bf16.mxu0 0
    %1342 = vmatpush2.bf16.msra.mxu0 0
    %1343 = vmatprep.subr.bf16.mxu0 0
    %1344 = vmatpush2.bf16.msra.mxu0 0
    %1345 = vmatprep.subr.bf16.mxu0 0
    %1346 = vmatpush2.bf16.msra.mxu0 0
    %1347 = vmatprep.mubr.bf16.mxu0 0
    %1348 = vmatmul.mubr.bf16.gmra.mxu0 %v1310
    %v1349 = vpop.f32.mrf.mxu0
    %v1350 = vadd.f32 0.0, %v1349
    %v1351 = vpop.f32.mrf.mxu0
    %v1352 = vpop.f32.mrf.mxu0
    %v1353 = vadd.f32 0.0, %v1352
    %v1354 = vpop.f32.mrf.mxu0
    %1355 = vdwg.mxu0
    %v1356 = vsel %vm70, %v1209, 0.0
    %v1357 = vsel %vm70, %v1256, 0.0
    %v1358 = vadd.f32 %v1356, %v1357
    %v1359 = vsel %vm70, %v1303, 0.0
    %v1360 = vadd.f32 %v1358, %v1359
    %v1361 = vsel %vm70, %v1350, 0.0
    %v1362 = vadd.f32 %v1360, %v1361
    %v1363 = vsel %vm70, %v1212, 0.0
    %v1364 = vsel %vm70, %v1259, 0.0
    %v1365 = vadd.f32 %v1363, %v1364
    %v1366 = vsel %vm70, %v1306, 0.0
    %v1367 = vadd.f32 %v1365, %v1366
    %v1368 = vsel %vm70, %v1353, 0.0
    %v1369 = vadd.f32 %v1367, %v1368
    %v1370 = vlaneseq
    %v1371 = vshrl.u32 %v1370, 7
    %v1372 = vsub.s32 0, %v1371
    %v1373 = vrot.slane %v50, %v1372
    %v1374 = vadd.f32 %v1362, %v1373
    %v1375 = vadd.f32 %v1369, %v1373
    %v1376 = vadd.f32 %v16, %v1374
    %v1377 = vadd.f32 %v17, %v1375
    %v1378 = vsel %vm70, %v1376, 0.0
    %v1379 = vrot.slane %v1378, 4
    %v1380 = vadd.f32 %v1378, %v1379
    %v1381 = vrot.slane %v1380, 2
    %v1382 = vadd.f32 %v1380, %v1381
    %v1383 = vrot.slane %v1382, 1
    %v1384 = vadd.f32 %v1382, %v1383
    %v1385 = vsel %vm70, %v1377, 0.0
    %v1386 = vrot.slane %v1385, 4
    %v1387 = vadd.f32 %v1385, %v1386
    %v1388 = vrot.slane %v1387, 2
    %v1389 = vadd.f32 %v1387, %v1388
    %v1390 = vrot.slane %v1389, 1
    %v1391 = vadd.f32 %v1389, %v1390
    %v1392 = vrcp.pop 8.0
    %v1393 = vmul.f32 %v1384, %v1392
    %v1394 = vmul.f32 %v1391, %v1392
    %v1395 = vsub.f32 %v1376, %v1393
    %v1396 = vsub.f32 %v1377, %v1394
    %v1397 = vmul.f32 %v1395, %v1395
    %v1398 = vmul.f32 %v1396, %v1396
    %v1399 = vsel %vm70, %v1397, 0.0
    %v1400 = vrot.slane %v1399, 4
    %v1401 = vadd.f32 %v1399, %v1400
    %v1402 = vrot.slane %v1401, 2
    %v1403 = vadd.f32 %v1401, %v1402
    %v1404 = vrot.slane %v1403, 1
    %v1405 = vadd.f32 %v1403, %v1404
    %v1406 = vsel %vm70, %v1398, 0.0
    %v1407 = vrot.slane %v1406, 4
    %v1408 = vadd.f32 %v1406, %v1407
    %v1409 = vrot.slane %v1408, 2
    %v1410 = vadd.f32 %v1408, %v1409
    %v1411 = vrot.slane %v1410, 1
    %v1412 = vadd.f32 %v1410, %v1411
    %v1413 = vmul.f32 %v1405, %v1392
    %v1414 = vmul.f32 %v1412, %v1392
    %v1415 = vadd.f32 %v1413, 1e-05
    %v1416 = vadd.f32 %v1414, 1e-05
    %v1417 = vrsqrt.pop %v1415
    %v1418 = vrsqrt.pop %v1416
    %v1419 = vmul.f32 %v1395, %v1417
    %v1420 = vmul.f32 %v1396, %v1418
    %v1421 = vlaneseq
    %v1422 = vshrl.u32 %v1421, 7
    %v1423 = vsub.s32 0, %v1422
    %v1424 = vrot.slane %v53, %v1423
    %v1425 = vmul.f32 %v1419, %v1424
    %v1426 = vmul.f32 %v1420, %v1424
    %v1427 = vlaneseq
    %v1428 = vshrl.u32 %v1427, 7
    %v1429 = vsub.s32 0, %v1428
    %v1430 = vrot.slane %v54, %v1429
    %v1431 = vadd.f32 %v1425, %v1430
    %v1432 = vadd.f32 %v1426, %v1430
    %v1433 = vpack.c.bf16 %v1432, %v1431
    %v1434 = vlaneseq
    %v1435 = vshrl.u32 %v1434, 7
    %v1436 = vsub.s32 0, %v1435
    %v1437 = vrot.slane %v51, %v1436
    %v1442 = vunpack.c.l.b16 %v38
    %v1443 = vunpack.c.l.b16 %v39
    %v1444 = vunpack.c.l.b16 %v40
    %v1445 = vunpack.c.l.b16 %v41
    %v1446 = vpack.c.b16 %v1443, %v1442
    %v1447 = vpack.c.b16 %v1445, %v1444
    %v1451 = vsel %vm70, %v1433, 0
    %1453 = vmatprep.subr.bf16.mxu0 0
    %1454 = vmatpush1.bf16.msra.mxu0 0
    %1455 = vmatprep.subr.bf16.mxu0 0
    %1456 = vmatpush1.bf16.msra.mxu0 0
    %1457 = vmatprep.subr.bf16.mxu0 0
    %1458 = vmatpush1.bf16.msra.mxu0 0
    %1459 = vmatprep.subr.bf16.mxu0 0
    %1460 = vmatpush1.bf16.msra.mxu0 0
    %1461 = vmatprep.subr.bf16.mxu0 0
    %1462 = vmatpush1.bf16.msra.mxu0 0
    %1463 = vmatprep.subr.bf16.mxu0 0
    %1464 = vmatpush1.bf16.msra.mxu0 0
    %1465 = vmatprep.subr.bf16.mxu0 0
    %1466 = vmatpush1.bf16.msra.mxu0 %v1447
    %1467 = vmatprep.subr.bf16.mxu0 0
    %1468 = vmatpush1.bf16.msra.mxu0 %v1446
    %1469 = vmatprep.subr.bf16.mxu0 0
    %1470 = vmatpush2.bf16.msra.mxu0 0
    %1471 = vmatprep.subr.bf16.mxu0 0
    %1472 = vmatpush2.bf16.msra.mxu0 0
    %1473 = vmatprep.subr.bf16.mxu0 0
    %1474 = vmatpush2.bf16.msra.mxu0 0
    %1475 = vmatprep.subr.bf16.mxu0 0
    %1476 = vmatpush2.bf16.msra.mxu0 0
    %1477 = vmatprep.subr.bf16.mxu0 0
    %1478 = vmatpush2.bf16.msra.mxu0 0
    %1479 = vmatprep.subr.bf16.mxu0 0
    %1480 = vmatpush2.bf16.msra.mxu0 0
    %1481 = vmatprep.subr.bf16.mxu0 0
    %1482 = vmatpush2.bf16.msra.mxu0 0
    %1483 = vmatprep.subr.bf16.mxu0 0
    %1484 = vmatpush2.bf16.msra.mxu0 0
    %1485 = vmatprep.mubr.bf16.mxu0 0
    %1486 = vmatmul.mubr.bf16.gmra.mxu0 %v1451
    %v1487 = vpop.f32.mrf.mxu0
    %v1488 = vadd.f32 %v1437, %v1487
    %v1489 = vpop.f32.mrf.mxu0
    %v1490 = vpop.f32.mrf.mxu0
    %v1491 = vadd.f32 %v1437, %v1490
    %v1492 = vpop.f32.mrf.mxu0
    %1493 = vdwg.mxu0
    %v1494 = vmax.f32 %v1488, 0.0
    %v1495 = vmax.f32 %v1491, 0.0
    %v1496 = vpack.c.bf16 %v1495, %v1494
    %v1497 = vlaneseq
    %v1498 = vshrl.u32 %v1497, 7
    %v1499 = vsub.s32 0, %v1498
    %v1500 = vrot.slane %v52, %v1499
    %v1509 = vunpack.c.l.b16 %v42
    %v1510 = vunpack.c.l.b16 %v43
    %v1511 = vunpack.c.l.b16 %v44
    %v1512 = vunpack.c.l.b16 %v45
    %v1513 = vunpack.c.l.b16 %v46
    %v1514 = vunpack.c.l.b16 %v47
    %v1515 = vunpack.c.l.b16 %v48
    %v1516 = vunpack.c.l.b16 %v49
    %v1517 = vpack.c.b16 %v1510, %v1509
    %v1518 = vpack.c.b16 %v1512, %v1511
    %v1519 = vpack.c.b16 %v1514, %v1513
    %v1520 = vpack.c.b16 %v1516, %v1515
    %vm1525 = vcmask 523264
    %v1527 = vsel %vm1525, %v1496, 0
    %1529 = vmatprep.subr.bf16.mxu0 0
    %1530 = vmatpush1.bf16.msra.mxu0 0
    %1531 = vmatprep.subr.bf16.mxu0 0
    %1532 = vmatpush1.bf16.msra.mxu0 0
    %1533 = vmatprep.subr.bf16.mxu0 0
    %1534 = vmatpush1.bf16.msra.mxu0 0
    %1535 = vmatprep.subr.bf16.mxu0 0
    %1536 = vmatpush1.bf16.msra.mxu0 0
    %1537 = vmatprep.subr.bf16.mxu0 0
    %1538 = vmatpush1.bf16.msra.mxu0 %v1520
    %1539 = vmatprep.subr.bf16.mxu0 0
    %1540 = vmatpush1.bf16.msra.mxu0 %v1519
    %1541 = vmatprep.subr.bf16.mxu0 0
    %1542 = vmatpush1.bf16.msra.mxu0 %v1518
    %1543 = vmatprep.subr.bf16.mxu0 0
    %1544 = vmatpush1.bf16.msra.mxu0 %v1517
    %1545 = vmatprep.subr.bf16.mxu0 0
    %1546 = vmatpush2.bf16.msra.mxu0 0
    %1547 = vmatprep.subr.bf16.mxu0 0
    %1548 = vmatpush2.bf16.msra.mxu0 0
    %1549 = vmatprep.subr.bf16.mxu0 0
    %1550 = vmatpush2.bf16.msra.mxu0 0
    %1551 = vmatprep.subr.bf16.mxu0 0
    %1552 = vmatpush2.bf16.msra.mxu0 0
    %1553 = vmatprep.subr.bf16.mxu0 0
    %1554 = vmatpush2.bf16.msra.mxu0 0
    %1555 = vmatprep.subr.bf16.mxu0 0
    %1556 = vmatpush2.bf16.msra.mxu0 0
    %1557 = vmatprep.subr.bf16.mxu0 0
    %1558 = vmatpush2.bf16.msra.mxu0 0
    %1559 = vmatprep.subr.bf16.mxu0 0
    %1560 = vmatpush2.bf16.msra.mxu0 0
    %1561 = vmatprep.mubr.bf16.mxu0 0
    %1562 = vmatmul.mubr.bf16.gmra.mxu0 %v1527
    %v1563 = vpop.f32.mrf.mxu0
    %v1564 = vadd.f32 %v1500, %v1563
    %v1565 = vpop.f32.mrf.mxu0
    %v1566 = vpop.f32.mrf.mxu0
    %v1567 = vadd.f32 %v1500, %v1566
    %v1568 = vpop.f32.mrf.mxu0
    %1569 = vdwg.mxu0
    %v1570 = vadd.f32 %v1431, %v1564
    %v1571 = vadd.f32 %v1432, %v1567
    %v1572 = vsel %vm70, %v1570, 0.0
    %v1573 = vrot.slane %v1572, 4
    %v1574 = vadd.f32 %v1572, %v1573
    %v1575 = vrot.slane %v1574, 2
    %v1576 = vadd.f32 %v1574, %v1575
    %v1577 = vrot.slane %v1576, 1
    %v1578 = vadd.f32 %v1576, %v1577
    %v1579 = vsel %vm70, %v1571, 0.0
    %v1580 = vrot.slane %v1579, 4
    %v1581 = vadd.f32 %v1579, %v1580
    %v1582 = vrot.slane %v1581, 2
    %v1583 = vadd.f32 %v1581, %v1582
    %v1584 = vrot.slane %v1583, 1
    %v1585 = vadd.f32 %v1583, %v1584
    %v1586 = vmul.f32 %v1578, %v1392
    %v1587 = vmul.f32 %v1585, %v1392
    %v1588 = vsub.f32 %v1570, %v1586
    %v1589 = vsub.f32 %v1571, %v1587
    %v1590 = vmul.f32 %v1588, %v1588
    %v1591 = vmul.f32 %v1589, %v1589
    %v1592 = vsel %vm70, %v1590, 0.0
    %v1593 = vrot.slane %v1592, 4
    %v1594 = vadd.f32 %v1592, %v1593
    %v1595 = vrot.slane %v1594, 2
    %v1596 = vadd.f32 %v1594, %v1595
    %v1597 = vrot.slane %v1596, 1
    %v1598 = vadd.f32 %v1596, %v1597
    %v1599 = vsel %vm70, %v1591, 0.0
    %v1600 = vrot.slane %v1599, 4
    %v1601 = vadd.f32 %v1599, %v1600
    %v1602 = vrot.slane %v1601, 2
    %v1603 = vadd.f32 %v1601, %v1602
    %v1604 = vrot.slane %v1603, 1
    %v1605 = vadd.f32 %v1603, %v1604
    %v1606 = vmul.f32 %v1598, %v1392
    %v1607 = vmul.f32 %v1605, %v1392
    %v1608 = vadd.f32 %v1606, 1e-05
    %v1609 = vadd.f32 %v1607, 1e-05
    %v1610 = vrsqrt.pop %v1608
    %v1611 = vrsqrt.pop %v1609
    %v1612 = vmul.f32 %v1588, %v1610
    %v1613 = vmul.f32 %v1589, %v1611
    %v1614 = vlaneseq
    %v1615 = vshrl.u32 %v1614, 7
    %v1616 = vsub.s32 0, %v1615
    %v1617 = vrot.slane %v55, %v1616
    %v1618 = vmul.f32 %v1612, %v1617
    %v1619 = vmul.f32 %v1613, %v1617
    %v1620 = vlaneseq
    %v1621 = vshrl.u32 %v1620, 7
    %v1622 = vsub.s32 0, %v1621
    %v1623 = vrot.slane %v56, %v1622
    %v1624 = vadd.f32 %v1618, %v1623
    %v1625 = vadd.f32 %v1619, %v1623
    %1626 = vst.msk [vmem:[#allocation2] sm:$0xff] %vm70, %v1624
    %1627 = vst.msk [vmem:[#allocation2 + $0x8] sm:$0xff] %vm70, %v1625
    // Predicated region
    $region14: #{tpu_custom_call.1} parent=1 // pred_check
      _
    $region15: #{tpu_custom_call.1} parent=1 // pred_check_branch
      %1629 = sbr.rel (0) target = $region17
    $region16: #{tpu_custom_call.1} parent=1 // pred_region
      %s1631 = ssub.s32 256, 256
      %1632 = vsyncadd [#allocation3], %s1631
      %s1633 = sshll.u32 [#allocation2], 4
      %s1634 = int_to_ptr.vmem [resolvable:$true] %s1633
      %1639 = dma.vmem_to_hbm [thread:$0]  %s1634, 256, %s3, [#allocation3], 128, 128, 8
    $region17: #{tpu_custom_call.1} parent=1 // pred_fallthru
      _
    // Predicated region
    $region18: #{tpu_custom_call.1} parent=1 // pred_check
      _
    $region19: #{tpu_custom_call.1} parent=1 // pred_check_branch
      %1641 = sbr.rel (0) target = $region21
    $region20: #{tpu_custom_call.1} parent=1 // pred_region
      %1642 = dma.done [#allocation3], 256
    $region21: #{tpu_custom_call.1} parent=1 // pred_fallthru
      _
    %1643 = vsyncpa [#allocation3], 1

</llo_original>
